<compile_context>
chip_gen: v5e
topology: v5e:2x2
jax: 0.10.0
libtpu: 0.0.40
codegen_flags: <defaults>
</compile_context>

<pallas_src>
import functools
import math

import jax
import jax.numpy as jnp
from jax import lax
from jax.experimental import pallas as pl
from jax.experimental.pallas import tpu as pltpu

_EPS = 1e-5


# ----------------------------------------------------------------------------- helpers
def _layer_norm(y, g, b):
    """Biased-variance LayerNorm over the last axis (f32 math)."""
    mu = jnp.mean(y, axis=-1, keepdims=True)
    d = y - mu
    var = jnp.mean(d * d, axis=-1, keepdims=True)
    return d * lax.rsqrt(var + _EPS) * g + b


def _vmem_limit_bytes():
    try:
        cap = int(pltpu.get_tpu_info().vmem_capacity_bytes)
    except Exception:                       # conservative fallback (v7x-sized VMEM)
        cap = 64 << 20
    return int(min(cap * 3 // 4, 96 << 20))


_VMEM_LIMIT = _vmem_limit_bytes()
_TILE_BUDGET = min(24 << 20, _VMEM_LIMIT // 2)   # working-set budget used to size tiles


def _q_tile(sq, skv, d):
    """Largest 8-aligned q-tile whose fused-attention working set fits the budget."""
    per_row = (8 * d + 2 * skv) * 4              # xq/q/out (dbl-buffered) + score row, f32
    fixed = 10 * skv * d * 4 + 4 * d * d * 2     # xkv (dbl-buf) + k/v + bf16 weights
    avail = max(_TILE_BUDGET - fixed, per_row * 8)
    tq = max(8, (avail // per_row) // 8 * 8)
    return sq if sq <= tq else int(tq)


def _ffn_row_tile(m, d, f):
    """Largest 8-aligned FFN row tile whose working set fits the budget."""
    per_row = (8 * d + 2 * f) * 4                # x/out (dbl-buffered), LN temps, hidden
    fixed = 2 * d * f * 2 + 2 * (d + f) * 4      # bf16 weights + biases / LN params
    avail = max(_TILE_BUDGET - fixed, per_row * 8)
    tm = max(8, (avail // per_row) // 8 * 8)
    return m if m <= tm else int(tm)


# ----------------------------------------------------------------------------- kernels
def _mha_ln_kernel(xq_ref, xkv_ref, wq_ref, wk_ref, wv_ref, wo_ref,
                   bq_ref, bk_ref, bv_ref, bo_ref, g_ref, beta_ref,
                   out_ref, o_scr, *, nheads):
    """out = LayerNorm(xq + MHA(xq, xkv, xkv)) for one (batch, q-tile) grid point."""
    xq = xq_ref[0]                               # (tq, D)  f32
    xkv = xkv_ref[0]                             # (Skv, D) f32
    D = xq.shape[-1]
    dh = D // nheads

    xq_b = xq.astype(jnp.bfloat16)
    xkv_b = xkv.astype(jnp.bfloat16)

    # QKV projections: bf16 inputs, f32 accumulation (native MXU rate).
    q = jnp.dot(xq_b, wq_ref[...], preferred_element_type=jnp.float32) + bq_ref[...]
    k = jnp.dot(xkv_b, wk_ref[...], preferred_element_type=jnp.float32) + bk_ref[...]
    v = jnp.dot(xkv_b, wv_ref[...], preferred_element_type=jnp.float32) + bv_ref[...]

    q = q * (1.0 / math.sqrt(dh))                # fold scale into q (tq*D, not tq*Skv)
    q_b = q.astype(jnp.bfloat16)
    k_b = k.astype(jnp.bfloat16)
    v_b = v.astype(jnp.bfloat16)

    # Per-head attention (static unroll; nheads is small).  Head outputs are written at
    # lane offset h*dh into a (tq, D) scratch so the out-projection is one full-K matmul.
    for h in range(nheads):
        sl = slice(h * dh, (h + 1) * dh)
        s = lax.dot_general(q_b[:, sl], k_b[:, sl], (((1,), (1,)), ((), ())),
                            preferred_element_type=jnp.float32)        # (tq, Skv)
        s = s - jnp.max(s, axis=-1, keepdims=True)
        e = jnp.exp(s)                                                  # f32
        inv = 1.0 / jnp.sum(e, axis=-1, keepdims=True)                  # (tq, 1)
        oh = jnp.dot(e.astype(jnp.bfloat16), v_b[:, sl],
                     preferred_element_type=jnp.float32)                # (tq, dh)
        o_scr[:, sl] = oh * inv                  # denom applied on the small tensor

    # Single full-contraction out-projection + residual + LayerNorm (f32 epilogue).
    o_b = o_scr[...].astype(jnp.bfloat16)
    y = xq + jnp.dot(o_b, wo_ref[...], preferred_element_type=jnp.float32) + bo_ref[...]
    out_ref[0] = _layer_norm(y, g_ref[...], beta_ref[...]).astype(out_ref.dtype)


def _ffn_ln_kernel(x_ref, w1_ref, b1_ref, w2_ref, b2_ref, g_ref, beta_ref,
                   g2_ref, beta2_ref, out_ref, *, fuse_final):
    """out = LN(x + Linear2(relu(Linear1(x)))); optionally the stack-final LN is fused."""
    x = x_ref[...]                                                      # (tm, D) f32
    h = jnp.dot(x.astype(jnp.bfloat16), w1_ref[...],
                preferred_element_type=jnp.float32) + b1_ref[...]
    h = jnp.maximum(h, 0.0)
    y = x + jnp.dot(h.astype(jnp.bfloat16), w2_ref[...],
                    preferred_element_type=jnp.float32) + b2_ref[...]
    y = _layer_norm(y, g_ref[...], beta_ref[...])
    if fuse_final:                               # static flag: fold encoder/decoder norm
        y = _layer_norm(y, g2_ref[...], beta2_ref[...])
    out_ref[...] = y.astype(out_ref.dtype)


# ----------------------------------------------------------------------------- wrappers
def mha_block(xq, xkv, p, nheads):
    """LayerNorm(xq + MHA(xq, xkv, xkv)); 2-D (batch, q-tile) parallel grid."""
    B, Sq, D = xq.shape
    Skv = xkv.shape[1]
    assert D % nheads == 0, "d_model must be divisible by nheads"
    tq = _q_tile(Sq, Skv, D)
    bf = jnp.bfloat16
    wspec = pl.BlockSpec((D, D), lambda b, i: (0, 0))
    vspec = pl.BlockSpec((1, D), lambda b, i: (0, 0))
    return pl.pallas_call(
        functools.partial(_mha_ln_kernel, nheads=nheads),
        out_shape=jax.ShapeDtypeStruct((B, Sq, D), xq.dtype),
        grid=(B, pl.cdiv(Sq, tq)),
        in_specs=[
            pl.BlockSpec((1, tq, D), lambda b, i: (b, i, 0)),
            pl.BlockSpec((1, Skv, D), lambda b, i: (b, 0, 0)),
            wspec, wspec, wspec, wspec,
            vspec, vspec, vspec, vspec, vspec, vspec,
        ],
        out_specs=pl.BlockSpec((1, tq, D), lambda b, i: (b, i, 0)),
        scratch_shapes=[pltpu.VMEM((tq, D), jnp.float32)],
        compiler_params=pltpu.CompilerParams(
            dimension_semantics=("parallel", "parallel"),
            vmem_limit_bytes=_VMEM_LIMIT),
    )(xq, xkv,
      p["wq"].astype(bf), p["wk"].astype(bf), p["wv"].astype(bf), p["wo"].astype(bf),
      p["bq"], p["bk"], p["bv"], p["bo"], p["ln_g"], p["ln_b"])


def ffn_block(x, p, final_ln=None):
    """LN(x + FFN(x)) on a row-flattened (B*S, D) view; optional fused stack-final LN."""
    B, S, D = x.shape
    F = p["w1"].shape[1]
    M = B * S
    tm = _ffn_row_tile(M, D, F)
    x2 = x.reshape(M, D)
    bf = jnp.bfloat16
    fuse = final_ln is not None
    g2 = final_ln["g"] if fuse else p["ln_g"]    # placeholders when not fusing (unused)
    b2 = final_ln["b"] if fuse else p["ln_b"]
    vD = pl.BlockSpec((1, D), lambda i: (0, 0))
    out = pl.pallas_call(
        functools.partial(_ffn_ln_kernel, fuse_final=fuse),
        out_shape=jax.ShapeDtypeStruct((M, D), x.dtype),
        grid=(pl.cdiv(M, tm),),
        in_specs=[
            pl.BlockSpec((tm, D), lambda i: (i, 0)),
            pl.BlockSpec((D, F), lambda i: (0, 0)),
            pl.BlockSpec((1, F), lambda i: (0, 0)),
            pl.BlockSpec((F, D), lambda i: (0, 0)),
            vD, vD, vD, vD, vD,
        ],
        out_specs=pl.BlockSpec((tm, D), lambda i: (i, 0)),
        compiler_params=pltpu.CompilerParams(
            dimension_semantics=("parallel",),
            vmem_limit_bytes=_VMEM_LIMIT),
    )(x2, p["w1"].astype(bf), p["b1"], p["w2"].astype(bf), p["b2"],
      p["ln_g"], p["ln_b"], g2, b2)
    return out.reshape(B, S, D)


# ----------------------------------------------------------------------------- model
def encoder_layer(x, p, nheads, final_ln=None):
    x = mha_block(x, x, p["self_attn"], nheads)
    return ffn_block(x, p["ffn"], final_ln=final_ln)


def decoder_layer(x, memory, p, nheads, final_ln=None):
    x = mha_block(x, x, p["self_attn"], nheads)
    x = mha_block(x, memory, p["cross_attn"], nheads)
    return ffn_block(x, p["ffn"], final_ln=final_ln)


def self_cross_encoder(target, source, params, nheads):
    """SelfCrossEncoder.forward(target, source) -> nn.Transformer(src=source, tgt=target)."""
    enc, dec = params["enc_layers"], params["dec_layers"]
    assert enc and dec
    mem = source
    for li, lp in enumerate(enc):
        mem = encoder_layer(mem, lp, nheads,
                            final_ln=params["enc_norm"] if li == len(enc) - 1 else None)
    out = target
    for li, lp in enumerate(dec):
        out = decoder_layer(out, mem, lp, nheads,
                            final_ln=params["dec_norm"] if li == len(dec) - 1 else None)
    return out


# ----------------------------------------------------------------------------- params
def init_params(key, d_model, hidden_dim, nlayers):
    keys = iter(jax.random.split(key, 16 + nlayers * 64))

    def rnd(shape, scale):
        return jax.random.normal(next(keys), shape, jnp.float32) * scale

    def ln():
        return dict(g=1.0 + rnd((1, d_model), 0.05), b=rnd((1, d_model), 0.05))

    def attn():
        s = 1.0 / math.sqrt(d_model)
        return dict(
            wq=rnd((d_model, d_model), s), wk=rnd((d_model, d_model), s),
            wv=rnd((d_model, d_model), s), wo=rnd((d_model, d_model), s),
            bq=rnd((1, d_model), 0.02), bk=rnd((1, d_model), 0.02),
            bv=rnd((1, d_model), 0.02), bo=rnd((1, d_model), 0.02),
            ln_g=1.0 + rnd((1, d_model), 0.05), ln_b=rnd((1, d_model), 0.05),
        )

    def ffn():
        return dict(
            w1=rnd((d_model, hidden_dim), 1.0 / math.sqrt(d_model)),
            b1=rnd((1, hidden_dim), 0.02),
            w2=rnd((hidden_dim, d_model), 1.0 / math.sqrt(hidden_dim)),
            b2=rnd((1, d_model), 0.02),
            ln_g=1.0 + rnd((1, d_model), 0.05), ln_b=rnd((1, d_model), 0.05),
        )

    return dict(
        enc_layers=[dict(self_attn=attn(), ffn=ffn()) for _ in range(nlayers)],
        dec_layers=[dict(self_attn=attn(), cross_attn=attn(), ffn=ffn()) for _ in range(nlayers)],
        enc_norm=ln(), dec_norm=ln(),
    )


# ----------------------------------------------------------------------------- reference
# Pure-JAX reference using the same bf16-operand / f32-accumulate matmul numerics as the
# kernels (f32 elementwise), so the comparison is tight.
def _ref_mha_ln(xq, xkv, p, nheads):
    B, Sq, D = xq.shape
    Skv = xkv.shape[1]
    dh = D // nheads
    bf = jnp.bfloat16
    q = jnp.einsum("bsd,de->bse", xq.astype(bf), p["wq"].astype(bf),
                   preferred_element_type=jnp.float32) + p["bq"]
    k = jnp.einsum("bsd,de->bse", xkv.astype(bf), p["wk"].astype(bf),
                   preferred_element_type=jnp.float32) + p["bk"]
    v = jnp.einsum("bsd,de->bse", xkv.astype(bf), p["wv"].astype(bf),
                   preferred_element_type=jnp.float32) + p["bv"]
    q = q * (1.0 / math.sqrt(dh))
    qh = q.reshape(B, Sq, nheads, dh).astype(bf)
    kh = k.reshape(B, Skv, nheads, dh).astype(bf)
    vh = v.reshape(B, Skv, nheads, dh).astype(bf)
    s = jnp.einsum("bqhd,bkhd->bhqk", qh, kh, preferred_element_type=jnp.float32)
    s = s - jnp.max(s, axis=-1, keepdims=True)
    e = jnp.exp(s)
    inv = 1.0 / jnp.sum(e, axis=-1, keepdims=True)
    o = jnp.einsum("bhqk,bkhd->bhqd", e.astype(bf), vh,
                   preferred_element_type=jnp.float32) * inv
    o = o.transpose(0, 2, 1, 3).reshape(B, Sq, D).astype(bf)
    y = xq + jnp.einsum("bsd,de->bse", o, p["wo"].astype(bf),
                        preferred_element_type=jnp.float32) + p["bo"]
    return _layer_norm(y, p["ln_g"], p["ln_b"])


def _ref_ffn_ln(x, p):
    bf = jnp.bfloat16
    h = jnp.einsum("bsd,df->bsf", x.astype(bf), p["w1"].astype(bf),
                   preferred_element_type=jnp.float32) + p["b1"]
    h = jnp.maximum(h, 0.0)
    y = x + jnp.einsum("bsf,fd->bsd", h.astype(bf), p["w2"].astype(bf),
                       preferred_element_type=jnp.float32) + p["b2"]
    return _layer_norm(y, p["ln_g"], p["ln_b"])


def _ref_self_cross_encoder(target, source, params, nheads):
    mem = source
    for lp in params["enc_layers"]:
        mem = _ref_mha_ln(mem, mem, lp["self_attn"], nheads)
        mem = _ref_ffn_ln(mem, lp["ffn"])
    mem = _layer_norm(mem, params["enc_norm"]["g"], params["enc_norm"]["b"])
    out = target
    for lp in params["dec_layers"]:
        out = _ref_mha_ln(out, out, lp["self_attn"], nheads)
        out = _ref_mha_ln(out, mem, lp["cross_attn"], nheads)
        out = _ref_ffn_ln(out, lp["ffn"])
    return _layer_norm(out, params["dec_norm"]["g"], params["dec_norm"]["b"])


# ----------------------------------------------------------------------------- demo
if __name__ == "__main__":
    # NOTE: for production shapes, d_model should ideally be a multiple of 128 (lane-dense
    # stores / full MXU columns); the demo intentionally uses small shapes.
    d_model, hidden_dim, nheads, nlayers = 32, 64, 4, 2
    batch, src_len, tgt_len = 2, 16, 8

    key = jax.random.PRNGKey(0)
    k_p, k_t, k_s = jax.random.split(key, 3)
    params = init_params(k_p, d_model, hidden_dim, nlayers)
    target = jax.random.normal(k_t, (batch, tgt_len, d_model), jnp.float32)
    source = jax.random.normal(k_s, (batch, src_len, d_model), jnp.float32)

    out = self_cross_encoder(target, source, params, nheads)
    out = jax.block_until_ready(out)

    expected = jax.block_until_ready(_ref_self_cross_encoder(target, source, params, nheads))

    assert out.shape == (batch, tgt_len, d_model) and out.dtype == target.dtype
    assert jnp.allclose(out, expected, atol=2e-3, rtol=2e-3), \
        float(jnp.max(jnp.abs(out - expected)))
    print("KERNEL_OK")
</pallas_src>

<mosaic_0001>
module attributes {stable_mosaic.version = 11 : i64} {
  func.func @_mha_ln_kernel(%arg0: i32, %arg1: i32, %arg2: memref<1x16x32xf32, #tpu.memory_space<vmem>>, %arg3: memref<1x16x32xf32, #tpu.memory_space<vmem>>, %arg4: memref<32x32xbf16, #tpu.memory_space<vmem>>, %arg5: memref<32x32xbf16, #tpu.memory_space<vmem>>, %arg6: memref<32x32xbf16, #tpu.memory_space<vmem>>, %arg7: memref<32x32xbf16, #tpu.memory_space<vmem>>, %arg8: memref<1x32xf32, #tpu.memory_space<vmem>>, %arg9: memref<1x32xf32, #tpu.memory_space<vmem>>, %arg10: memref<1x32xf32, #tpu.memory_space<vmem>>, %arg11: memref<1x32xf32, #tpu.memory_space<vmem>>, %arg12: memref<1x32xf32, #tpu.memory_space<vmem>>, %arg13: memref<1x32xf32, #tpu.memory_space<vmem>>, %arg14: memref<1x16x32xf32, #tpu.memory_space<vmem>>, %arg15: memref<16x32xf32, #tpu.memory_space<vmem>>) attributes {dimension_semantics = [#tpu.dimension_semantics<parallel>, #tpu.dimension_semantics<parallel>], iteration_bounds = array<i64: 2, 1>, scalar_prefetch = 0 : i64, scratch_operands = 1 : i64, tpu.core_type = #tpu.core_type<tc>, window_params = [{transform_indices = @transform_0, window_bounds = array<i64: 1, 16, 32>}, {transform_indices = @transform_1, window_bounds = array<i64: 1, 16, 32>}, {pipeline_mode = #tpu.pipeline_mode<synchronous>, transform_indices = @transform_2, window_bounds = array<i64: 32, 32>}, {pipeline_mode = #tpu.pipeline_mode<synchronous>, transform_indices = @transform_3, window_bounds = array<i64: 32, 32>}, {pipeline_mode = #tpu.pipeline_mode<synchronous>, transform_indices = @transform_4, window_bounds = array<i64: 32, 32>}, {pipeline_mode = #tpu.pipeline_mode<synchronous>, transform_indices = @transform_5, window_bounds = array<i64: 32, 32>}, {pipeline_mode = #tpu.pipeline_mode<synchronous>, transform_indices = @transform_6, window_bounds = array<i64: 1, 32>}, {pipeline_mode = #tpu.pipeline_mode<synchronous>, transform_indices = @transform_7, window_bounds = array<i64: 1, 32>}, {pipeline_mode = #tpu.pipeline_mode<synchronous>, transform_indices = @transform_8, window_bounds = array<i64: 1, 32>}, {pipeline_mode = #tpu.pipeline_mode<synchronous>, transform_indices = @transform_9, window_bounds = array<i64: 1, 32>}, {pipeline_mode = #tpu.pipeline_mode<synchronous>, transform_indices = @transform_10, window_bounds = array<i64: 1, 32>}, {pipeline_mode = #tpu.pipeline_mode<synchronous>, transform_indices = @transform_11, window_bounds = array<i64: 1, 32>}, {transform_indices = @transform_12, window_bounds = array<i64: 1, 16, 32>}]} {
    %c0 = arith.constant 0 : index
    %c0_0 = arith.constant 0 : index
    %c0_1 = arith.constant 0 : index
    %0 = vector.load %arg2[%c0, %c0_0, %c0_1] : memref<1x16x32xf32, #tpu.memory_space<vmem>>, vector<1x16x32xf32>
    %1 = vector.shape_cast %0 : vector<1x16x32xf32> to vector<16x32xf32>
    %c0_2 = arith.constant 0 : index
    %c0_3 = arith.constant 0 : index
    %c0_4 = arith.constant 0 : index
    %2 = vector.load %arg3[%c0_2, %c0_3, %c0_4] : memref<1x16x32xf32, #tpu.memory_space<vmem>>, vector<1x16x32xf32>
    %3 = vector.shape_cast %2 : vector<1x16x32xf32> to vector<16x32xf32>
    %4 = arith.truncf %1 : vector<16x32xf32> to vector<16x32xbf16>
    %5 = arith.truncf %3 : vector<16x32xf32> to vector<16x32xbf16>
    %c0_5 = arith.constant 0 : index
    %c0_6 = arith.constant 0 : index
    %6 = vector.load %arg4[%c0_5, %c0_6] : memref<32x32xbf16, #tpu.memory_space<vmem>>, vector<32x32xbf16>
    %cst = arith.constant dense<0.000000e+00> : vector<16x32xf32>
    %7 = tpu.matmul %4, %6, %cst {dimension_numbers = #tpu.dot_dimension_numbers<[1], [0], [0], [1], [0, 0, 1, 1], [], []>} : vector<16x32xbf16>, vector<32x32xbf16>, vector<16x32xf32> -> vector<16x32xf32>
    %c0_7 = arith.constant 0 : index
    %c0_8 = arith.constant 0 : index
    %8 = vector.load %arg8[%c0_7, %c0_8] : memref<1x32xf32, #tpu.memory_space<vmem>>, vector<1x32xf32>
    %9 = vector.broadcast %8 : vector<1x32xf32> to vector<16x32xf32>
    %10 = arith.addf %7, %9 : vector<16x32xf32>
    %c0_9 = arith.constant 0 : index
    %c0_10 = arith.constant 0 : index
    %11 = vector.load %arg5[%c0_9, %c0_10] : memref<32x32xbf16, #tpu.memory_space<vmem>>, vector<32x32xbf16>
    %cst_11 = arith.constant dense<0.000000e+00> : vector<16x32xf32>
    %12 = tpu.matmul %5, %11, %cst_11 {dimension_numbers = #tpu.dot_dimension_numbers<[1], [0], [0], [1], [0, 0, 1, 1], [], []>} : vector<16x32xbf16>, vector<32x32xbf16>, vector<16x32xf32> -> vector<16x32xf32>
    %c0_12 = arith.constant 0 : index
    %c0_13 = arith.constant 0 : index
    %13 = vector.load %arg9[%c0_12, %c0_13] : memref<1x32xf32, #tpu.memory_space<vmem>>, vector<1x32xf32>
    %14 = vector.broadcast %13 : vector<1x32xf32> to vector<16x32xf32>
    %15 = arith.addf %12, %14 : vector<16x32xf32>
    %c0_14 = arith.constant 0 : index
    %c0_15 = arith.constant 0 : index
    %16 = vector.load %arg6[%c0_14, %c0_15] : memref<32x32xbf16, #tpu.memory_space<vmem>>, vector<32x32xbf16>
    %cst_16 = arith.constant dense<0.000000e+00> : vector<16x32xf32>
    %17 = tpu.matmul %5, %16, %cst_16 {dimension_numbers = #tpu.dot_dimension_numbers<[1], [0], [0], [1], [0, 0, 1, 1], [], []>} : vector<16x32xbf16>, vector<32x32xbf16>, vector<16x32xf32> -> vector<16x32xf32>
    %c0_17 = arith.constant 0 : index
    %c0_18 = arith.constant 0 : index
    %18 = vector.load %arg10[%c0_17, %c0_18] : memref<1x32xf32, #tpu.memory_space<vmem>>, vector<1x32xf32>
    %19 = vector.broadcast %18 : vector<1x32xf32> to vector<16x32xf32>
    %20 = arith.addf %17, %19 : vector<16x32xf32>
    %cst_19 = arith.constant 0.353553385 : f32
    %21 = vector.broadcast %cst_19 : f32 to vector<16x32xf32>
    %22 = arith.mulf %10, %21 : vector<16x32xf32>
    %23 = arith.truncf %22 : vector<16x32xf32> to vector<16x32xbf16>
    %24 = arith.truncf %15 : vector<16x32xf32> to vector<16x32xbf16>
    %25 = arith.truncf %20 : vector<16x32xf32> to vector<16x32xbf16>
    %26 = vector.extract_strided_slice %23 {offsets = [0, 0], sizes = [16, 8], strides = [1, 1]} : vector<16x32xbf16> to vector<16x8xbf16>
    %27 = vector.extract_strided_slice %24 {offsets = [0, 0], sizes = [16, 8], strides = [1, 1]} : vector<16x32xbf16> to vector<16x8xbf16>
    %cst_20 = arith.constant dense<0.000000e+00> : vector<16x16xf32>
    %28 = tpu.matmul %26, %27, %cst_20 {dimension_numbers = #tpu.dot_dimension_numbers<[1], [1], [0], [0], [0, 0, 1, 0], [], []>} : vector<16x8xbf16>, vector<16x8xbf16>, vector<16x16xf32> -> vector<16x16xf32>
    %cst_21 = arith.constant dense<0xFF800000> : vector<16xf32>
    %29 = vector.multi_reduction <maximumf>, %28, %cst_21 [1] : vector<16x16xf32> to vector<16xf32>
    %30 = vector.shape_cast %29 : vector<16xf32> to vector<16x1xf32>
    %31 = vector.broadcast %30 : vector<16x1xf32> to vector<16x16xf32>
    %32 = arith.subf %28, %31 : vector<16x16xf32>
    %33 = math.exp %32 : vector<16x16xf32>
    %cst_22 = arith.constant dense<0.000000e+00> : vector<16xf32>
    %34 = vector.multi_reduction <add>, %33, %cst_22 [1] : vector<16x16xf32> to vector<16xf32>
    %35 = vector.shape_cast %34 : vector<16xf32> to vector<16x1xf32>
    %cst_23 = arith.constant 1.000000e+00 : f32
    %36 = vector.broadcast %cst_23 : f32 to vector<16x1xf32>
    %37 = arith.divf %36, %35 : vector<16x1xf32>
    %38 = arith.truncf %33 : vector<16x16xf32> to vector<16x16xbf16>
    %39 = vector.extract_strided_slice %25 {offsets = [0, 0], sizes = [16, 8], strides = [1, 1]} : vector<16x32xbf16> to vector<16x8xbf16>
    %cst_24 = arith.constant dense<0.000000e+00> : vector<16x8xf32>
    %40 = tpu.matmul %38, %39, %cst_24 {dimension_numbers = #tpu.dot_dimension_numbers<[1], [0], [0], [1], [0, 0, 1, 1], [], []>} : vector<16x16xbf16>, vector<16x8xbf16>, vector<16x8xf32> -> vector<16x8xf32>
    %41 = vector.broadcast %37 : vector<16x1xf32> to vector<16x8xf32>
    %42 = arith.mulf %40, %41 : vector<16x8xf32>
    %c0_25 = arith.constant 0 : index
    %c0_26 = arith.constant 0 : index
    %43 = vector.load %arg15[%c0_25, %c0_26] : memref<16x32xf32, #tpu.memory_space<vmem>>, vector<16x8xf32>
    tpu.vector_store %arg15[%c0_25, %c0_26], %42 {strides = array<i32>} : memref<16x32xf32, #tpu.memory_space<vmem>>, vector<16x8xf32>,
    %44 = vector.extract_strided_slice %23 {offsets = [0, 8], sizes = [16, 8], strides = [1, 1]} : vector<16x32xbf16> to vector<16x8xbf16>
    %45 = vector.extract_strided_slice %24 {offsets = [0, 8], sizes = [16, 8], strides = [1, 1]} : vector<16x32xbf16> to vector<16x8xbf16>
    %cst_27 = arith.constant dense<0.000000e+00> : vector<16x16xf32>
    %46 = tpu.matmul %44, %45, %cst_27 {dimension_numbers = #tpu.dot_dimension_numbers<[1], [1], [0], [0], [0, 0, 1, 0], [], []>} : vector<16x8xbf16>, vector<16x8xbf16>, vector<16x16xf32> -> vector<16x16xf32>
    %cst_28 = arith.constant dense<0xFF800000> : vector<16xf32>
    %47 = vector.multi_reduction <maximumf>, %46, %cst_28 [1] : vector<16x16xf32> to vector<16xf32>
    %48 = vector.shape_cast %47 : vector<16xf32> to vector<16x1xf32>
    %49 = vector.broadcast %48 : vector<16x1xf32> to vector<16x16xf32>
    %50 = arith.subf %46, %49 : vector<16x16xf32>
    %51 = math.exp %50 : vector<16x16xf32>
    %cst_29 = arith.constant dense<0.000000e+00> : vector<16xf32>
    %52 = vector.multi_reduction <add>, %51, %cst_29 [1] : vector<16x16xf32> to vector<16xf32>
    %53 = vector.shape_cast %52 : vector<16xf32> to vector<16x1xf32>
    %cst_30 = arith.constant 1.000000e+00 : f32
    %54 = vector.broadcast %cst_30 : f32 to vector<16x1xf32>
    %55 = arith.divf %54, %53 : vector<16x1xf32>
    %56 = arith.truncf %51 : vector<16x16xf32> to vector<16x16xbf16>
    %57 = vector.extract_strided_slice %25 {offsets = [0, 8], sizes = [16, 8], strides = [1, 1]} : vector<16x32xbf16> to vector<16x8xbf16>
    %cst_31 = arith.constant dense<0.000000e+00> : vector<16x8xf32>
    %58 = tpu.matmul %56, %57, %cst_31 {dimension_numbers = #tpu.dot_dimension_numbers<[1], [0], [0], [1], [0, 0, 1, 1], [], []>} : vector<16x16xbf16>, vector<16x8xbf16>, vector<16x8xf32> -> vector<16x8xf32>
    %59 = vector.broadcast %55 : vector<16x1xf32> to vector<16x8xf32>
    %60 = arith.mulf %58, %59 : vector<16x8xf32>
    %c0_32 = arith.constant 0 : index
    %c8 = arith.constant 8 : index
    %61 = vector.load %arg15[%c0_32, %c8] : memref<16x32xf32, #tpu.memory_space<vmem>>, vector<16x8xf32>
    tpu.vector_store %arg15[%c0_32, %c8], %60 {strides = array<i32>} : memref<16x32xf32, #tpu.memory_space<vmem>>, vector<16x8xf32>,
    %62 = vector.extract_strided_slice %23 {offsets = [0, 16], sizes = [16, 8], strides = [1, 1]} : vector<16x32xbf16> to vector<16x8xbf16>
    %63 = vector.extract_strided_slice %24 {offsets = [0, 16], sizes = [16, 8], strides = [1, 1]} : vector<16x32xbf16> to vector<16x8xbf16>
    %cst_33 = arith.constant dense<0.000000e+00> : vector<16x16xf32>
    %64 = tpu.matmul %62, %63, %cst_33 {dimension_numbers = #tpu.dot_dimension_numbers<[1], [1], [0], [0], [0, 0, 1, 0], [], []>} : vector<16x8xbf16>, vector<16x8xbf16>, vector<16x16xf32> -> vector<16x16xf32>
    %cst_34 = arith.constant dense<0xFF800000> : vector<16xf32>
    %65 = vector.multi_reduction <maximumf>, %64, %cst_34 [1] : vector<16x16xf32> to vector<16xf32>
    %66 = vector.shape_cast %65 : vector<16xf32> to vector<16x1xf32>
    %67 = vector.broadcast %66 : vector<16x1xf32> to vector<16x16xf32>
    %68 = arith.subf %64, %67 : vector<16x16xf32>
    %69 = math.exp %68 : vector<16x16xf32>
    %cst_35 = arith.constant dense<0.000000e+00> : vector<16xf32>
    %70 = vector.multi_reduction <add>, %69, %cst_35 [1] : vector<16x16xf32> to vector<16xf32>
    %71 = vector.shape_cast %70 : vector<16xf32> to vector<16x1xf32>
    %cst_36 = arith.constant 1.000000e+00 : f32
    %72 = vector.broadcast %cst_36 : f32 to vector<16x1xf32>
    %73 = arith.divf %72, %71 : vector<16x1xf32>
    %74 = arith.truncf %69 : vector<16x16xf32> to vector<16x16xbf16>
    %75 = vector.extract_strided_slice %25 {offsets = [0, 16], sizes = [16, 8], strides = [1, 1]} : vector<16x32xbf16> to vector<16x8xbf16>
    %cst_37 = arith.constant dense<0.000000e+00> : vector<16x8xf32>
    %76 = tpu.matmul %74, %75, %cst_37 {dimension_numbers = #tpu.dot_dimension_numbers<[1], [0], [0], [1], [0, 0, 1, 1], [], []>} : vector<16x16xbf16>, vector<16x8xbf16>, vector<16x8xf32> -> vector<16x8xf32>
    %77 = vector.broadcast %73 : vector<16x1xf32> to vector<16x8xf32>
    %78 = arith.mulf %76, %77 : vector<16x8xf32>
    %c0_38 = arith.constant 0 : index
    %c16 = arith.constant 16 : index
    %79 = vector.load %arg15[%c0_38, %c16] : memref<16x32xf32, #tpu.memory_space<vmem>>, vector<16x8xf32>
    tpu.vector_store %arg15[%c0_38, %c16], %78 {strides = array<i32>} : memref<16x32xf32, #tpu.memory_space<vmem>>, vector<16x8xf32>,
    %80 = vector.extract_strided_slice %23 {offsets = [0, 24], sizes = [16, 8], strides = [1, 1]} : vector<16x32xbf16> to vector<16x8xbf16>
    %81 = vector.extract_strided_slice %24 {offsets = [0, 24], sizes = [16, 8], strides = [1, 1]} : vector<16x32xbf16> to vector<16x8xbf16>
    %cst_39 = arith.constant dense<0.000000e+00> : vector<16x16xf32>
    %82 = tpu.matmul %80, %81, %cst_39 {dimension_numbers = #tpu.dot_dimension_numbers<[1], [1], [0], [0], [0, 0, 1, 0], [], []>} : vector<16x8xbf16>, vector<16x8xbf16>, vector<16x16xf32> -> vector<16x16xf32>
    %cst_40 = arith.constant dense<0xFF800000> : vector<16xf32>
    %83 = vector.multi_reduction <maximumf>, %82, %cst_40 [1] : vector<16x16xf32> to vector<16xf32>
    %84 = vector.shape_cast %83 : vector<16xf32> to vector<16x1xf32>
    %85 = vector.broadcast %84 : vector<16x1xf32> to vector<16x16xf32>
    %86 = arith.subf %82, %85 : vector<16x16xf32>
    %87 = math.exp %86 : vector<16x16xf32>
    %cst_41 = arith.constant dense<0.000000e+00> : vector<16xf32>
    %88 = vector.multi_reduction <add>, %87, %cst_41 [1] : vector<16x16xf32> to vector<16xf32>
    %89 = vector.shape_cast %88 : vector<16xf32> to vector<16x1xf32>
    %cst_42 = arith.constant 1.000000e+00 : f32
    %90 = vector.broadcast %cst_42 : f32 to vector<16x1xf32>
    %91 = arith.divf %90, %89 : vector<16x1xf32>
    %92 = arith.truncf %87 : vector<16x16xf32> to vector<16x16xbf16>
    %93 = vector.extract_strided_slice %25 {offsets = [0, 24], sizes = [16, 8], strides = [1, 1]} : vector<16x32xbf16> to vector<16x8xbf16>
    %cst_43 = arith.constant dense<0.000000e+00> : vector<16x8xf32>
    %94 = tpu.matmul %92, %93, %cst_43 {dimension_numbers = #tpu.dot_dimension_numbers<[1], [0], [0], [1], [0, 0, 1, 1], [], []>} : vector<16x16xbf16>, vector<16x8xbf16>, vector<16x8xf32> -> vector<16x8xf32>
    %95 = vector.broadcast %91 : vector<16x1xf32> to vector<16x8xf32>
    %96 = arith.mulf %94, %95 : vector<16x8xf32>
    %c0_44 = arith.constant 0 : index
    %c24 = arith.constant 24 : index
    %97 = vector.load %arg15[%c0_44, %c24] : memref<16x32xf32, #tpu.memory_space<vmem>>, vector<16x8xf32>
    tpu.vector_store %arg15[%c0_44, %c24], %96 {strides = array<i32>} : memref<16x32xf32, #tpu.memory_space<vmem>>, vector<16x8xf32>,
    %c0_45 = arith.constant 0 : index
    %c0_46 = arith.constant 0 : index
    %98 = vector.load %arg15[%c0_45, %c0_46] : memref<16x32xf32, #tpu.memory_space<vmem>>, vector<16x32xf32>
    %99 = arith.truncf %98 : vector<16x32xf32> to vector<16x32xbf16>
    %c0_47 = arith.constant 0 : index
    %c0_48 = arith.constant 0 : index
    %100 = vector.load %arg7[%c0_47, %c0_48] : memref<32x32xbf16, #tpu.memory_space<vmem>>, vector<32x32xbf16>
    %cst_49 = arith.constant dense<0.000000e+00> : vector<16x32xf32>
    %101 = tpu.matmul %99, %100, %cst_49 {dimension_numbers = #tpu.dot_dimension_numbers<[1], [0], [0], [1], [0, 0, 1, 1], [], []>} : vector<16x32xbf16>, vector<32x32xbf16>, vector<16x32xf32> -> vector<16x32xf32>
    %102 = arith.addf %1, %101 : vector<16x32xf32>
    %c0_50 = arith.constant 0 : index
    %c0_51 = arith.constant 0 : index
    %103 = vector.load %arg11[%c0_50, %c0_51] : memref<1x32xf32, #tpu.memory_space<vmem>>, vector<1x32xf32>
    %104 = vector.broadcast %103 : vector<1x32xf32> to vector<16x32xf32>
    %105 = arith.addf %102, %104 : vector<16x32xf32>
    %c0_52 = arith.constant 0 : index
    %c0_53 = arith.constant 0 : index
    %106 = vector.load %arg12[%c0_52, %c0_53] : memref<1x32xf32, #tpu.memory_space<vmem>>, vector<1x32xf32>
    %c0_54 = arith.constant 0 : index
    %c0_55 = arith.constant 0 : index
    %107 = vector.load %arg13[%c0_54, %c0_55] : memref<1x32xf32, #tpu.memory_space<vmem>>, vector<1x32xf32>
    %cst_56 = arith.constant dense<0.000000e+00> : vector<16xf32>
    %108 = vector.multi_reduction <add>, %105, %cst_56 [1] : vector<16x32xf32> to vector<16xf32>
    %109 = vector.shape_cast %108 : vector<16xf32> to vector<16x1xf32>
    %cst_57 = arith.constant 3.200000e+01 : f32
    %110 = vector.broadcast %cst_57 : f32 to vector<16x1xf32>
    %111 = arith.divf %109, %110 : vector<16x1xf32>
    %112 = vector.broadcast %111 : vector<16x1xf32> to vector<16x32xf32>
    %113 = arith.subf %105, %112 : vector<16x32xf32>
    %114 = arith.mulf %113, %113 : vector<16x32xf32>
    %cst_58 = arith.constant dense<0.000000e+00> : vector<16xf32>
    %115 = vector.multi_reduction <add>, %114, %cst_58 [1] : vector<16x32xf32> to vector<16xf32>
    %116 = vector.shape_cast %115 : vector<16xf32> to vector<16x1xf32>
    %cst_59 = arith.constant 3.200000e+01 : f32
    %117 = vector.broadcast %cst_59 : f32 to vector<16x1xf32>
    %118 = arith.divf %116, %117 : vector<16x1xf32>
    %cst_60 = arith.constant 9.99999974E-6 : f32
    %119 = vector.broadcast %cst_60 : f32 to vector<16x1xf32>
    %120 = arith.addf %118, %119 : vector<16x1xf32>
    %121 = math.rsqrt %120 : vector<16x1xf32>
    %122 = vector.broadcast %121 : vector<16x1xf32> to vector<16x32xf32>
    %123 = arith.mulf %113, %122 : vector<16x32xf32>
    %124 = vector.broadcast %106 : vector<1x32xf32> to vector<16x32xf32>
    %125 = arith.mulf %123, %124 : vector<16x32xf32>
    %126 = vector.broadcast %107 : vector<1x32xf32> to vector<16x32xf32>
    %127 = arith.addf %125, %126 : vector<16x32xf32>
    %c0_61 = arith.constant 0 : index
    %c0_62 = arith.constant 0 : index
    %c0_63 = arith.constant 0 : index
    %128 = vector.load %arg14[%c0_61, %c0_62, %c0_63] : memref<1x16x32xf32, #tpu.memory_space<vmem>>, vector<1x16x32xf32>
    %129 = vector.shape_cast %128 : vector<1x16x32xf32> to vector<16x32xf32>
    %130 = vector.shape_cast %127 : vector<16x32xf32> to vector<1x16x32xf32>
    tpu.vector_store %arg14[%c0_61, %c0_62, %c0_63], %130 {strides = array<i32>} : memref<1x16x32xf32, #tpu.memory_space<vmem>>, vector<1x16x32xf32>,
    return
  }
  func.func @transform_0(%arg0: i32, %arg1: i32) -> (i32, i32, i32) {
    %c0_i32 = arith.constant 0 : i32
    %c0_i32_0 = arith.constant 0 : i32
    return %arg0, %arg1, %c0_i32 : i32, i32, i32
  }
  func.func @transform_1(%arg0: i32, %arg1: i32) -> (i32, i32, i32) {
    %c0_i32 = arith.constant 0 : i32
    %c0_i32_0 = arith.constant 0 : i32
    %c0_i32_1 = arith.constant 0 : i32
    return %arg0, %c0_i32, %c0_i32_0 : i32, i32, i32
  }
  func.func @transform_2(%arg0: i32, %arg1: i32) -> (i32, i32) {
    %c0_i32 = arith.constant 0 : i32
    %c0_i32_0 = arith.constant 0 : i32
    %c0_i32_1 = arith.constant 0 : i32
    return %c0_i32, %c0_i32_0 : i32, i32
  }
  func.func @transform_3(%arg0: i32, %arg1: i32) -> (i32, i32) {
    %c0_i32 = arith.constant 0 : i32
    %c0_i32_0 = arith.constant 0 : i32
    %c0_i32_1 = arith.constant 0 : i32
    return %c0_i32, %c0_i32_0 : i32, i32
  }
  func.func @transform_4(%arg0: i32, %arg1: i32) -> (i32, i32) {
    %c0_i32 = arith.constant 0 : i32
    %c0_i32_0 = arith.constant 0 : i32
    %c0_i32_1 = arith.constant 0 : i32
    return %c0_i32, %c0_i32_0 : i32, i32
  }
  func.func @transform_5(%arg0: i32, %arg1: i32) -> (i32, i32) {
    %c0_i32 = arith.constant 0 : i32
    %c0_i32_0 = arith.constant 0 : i32
    %c0_i32_1 = arith.constant 0 : i32
    return %c0_i32, %c0_i32_0 : i32, i32
  }
  func.func @transform_6(%arg0: i32, %arg1: i32) -> (i32, i32) {
    %c0_i32 = arith.constant 0 : i32
    %c0_i32_0 = arith.constant 0 : i32
    %c0_i32_1 = arith.constant 0 : i32
    return %c0_i32, %c0_i32_0 : i32, i32
  }
  func.func @transform_7(%arg0: i32, %arg1: i32) -> (i32, i32) {
    %c0_i32 = arith.constant 0 : i32
    %c0_i32_0 = arith.constant 0 : i32
    %c0_i32_1 = arith.constant 0 : i32
    return %c0_i32, %c0_i32_0 : i32, i32
  }
  func.func @transform_8(%arg0: i32, %arg1: i32) -> (i32, i32) {
    %c0_i32 = arith.constant 0 : i32
    %c0_i32_0 = arith.constant 0 : i32
    %c0_i32_1 = arith.constant 0 : i32
    return %c0_i32, %c0_i32_0 : i32, i32
  }
  func.func @transform_9(%arg0: i32, %arg1: i32) -> (i32, i32) {
    %c0_i32 = arith.constant 0 : i32
    %c0_i32_0 = arith.constant 0 : i32
    %c0_i32_1 = arith.constant 0 : i32
    return %c0_i32, %c0_i32_0 : i32, i32
  }
  func.func @transform_10(%arg0: i32, %arg1: i32) -> (i32, i32) {
    %c0_i32 = arith.constant 0 : i32
    %c0_i32_0 = arith.constant 0 : i32
    %c0_i32_1 = arith.constant 0 : i32
    return %c0_i32, %c0_i32_0 : i32, i32
  }
  func.func @transform_11(%arg0: i32, %arg1: i32) -> (i32, i32) {
    %c0_i32 = arith.constant 0 : i32
    %c0_i32_0 = arith.constant 0 : i32
    %c0_i32_1 = arith.constant 0 : i32
    return %c0_i32, %c0_i32_0 : i32, i32
  }
  func.func @transform_12(%arg0: i32, %arg1: i32) -> (i32, i32, i32) {
    %c0_i32 = arith.constant 0 : i32
    %c0_i32_0 = arith.constant 0 : i32
    return %arg0, %arg1, %c0_i32 : i32, i32, i32
  }
}

</mosaic_0001>

<llo_original>
// kernel: tpu_custom_call.1
$region0: #{tpu_custom_call.1}
  #allocation0 [shape = 'u32[]', space=smem, size = 0x4, offset = 0x4, fixed_abs, tag = 'smem constant byte address 0x4 - core index']
  #allocation1 [shape = 'u32[72,128]{1,0:T(1,128)}', space=vmem, size = 0x9000, scoped, tag = 'internal scratch']
  #allocation2 [shape = 'f32[16,32]{1,0:T(8,128)}', space=vmem, size = 0x2000, scoped, tag = 'scratch operand']
  %s0 = inlined_call_operand.hbm [shape: f32[2,16,32], index: 0, kind: input, shape index: {}]
  %s1 = inlined_call_operand.hbm [shape: f32[2,16,32], index: 1, kind: input, shape index: {}]
  %s2 = inlined_call_operand.hbm [shape: bf16[32,32], index: 2, kind: input, shape index: {}]
  %s3 = inlined_call_operand.hbm [shape: bf16[32,32], index: 3, kind: input, shape index: {}]
  %s4 = inlined_call_operand.hbm [shape: bf16[32,32], index: 4, kind: input, shape index: {}]
  %s5 = inlined_call_operand.hbm [shape: bf16[32,32], index: 5, kind: input, shape index: {}]
  %s6 = inlined_call_operand.vmem [shape: f32[1,32], index: 6, kind: input, shape index: {}]
  %s7 = inlined_call_operand.vmem [shape: f32[1,32], index: 7, kind: input, shape index: {}]
  %s8 = inlined_call_operand.vmem [shape: f32[1,32], index: 8, kind: input, shape index: {}]
  %s9 = inlined_call_operand.vmem [shape: f32[1,32], index: 9, kind: input, shape index: {}]
  %s10 = inlined_call_operand.vmem [shape: f32[1,32], index: 10, kind: input, shape index: {}]
  %s11 = inlined_call_operand.vmem [shape: f32[1,32], index: 11, kind: input, shape index: {}]
  %s12 = inlined_call_operand.hbm [shape: f32[2,16,32], index: 12, kind: output, shape index: {}]
  %s13 = sld [smem:[#allocation0]]
  $region105: #{tpu_custom_call.1} parent=0
    _
  %s15 = ssub.s32 1, %s13
  %s16 = scalar_select 0, %s15, %s13
  $region1: #{tpu_custom_call.1} parent=0
    #allocation3 [shape = 'u8[16384]{0}', space=vmem, size = 0x4000, scoped, tag = 'input window, operand 0']
    #allocation4 [shape = 's32[2]{0}', space=sflag, size = 0x8, scoped, tag = 'scoped memory for tpu_custom_call.1']
    #allocation5 [shape = 's32[2]{0}', space=sflag, size = 0x8, scoped, tag = 'scoped memory for tpu_custom_call.1']
    #allocation6 [shape = 'u8[16384]{0}', space=vmem, size = 0x4000, scoped, tag = 'input window, operand 1']
    #allocation7 [shape = 's32[2]{0}', space=sflag, size = 0x8, scoped, tag = 'scoped memory for tpu_custom_call.1']
    #allocation8 [shape = 'u8[8192]{0}', space=vmem, size = 0x2000, scoped, tag = 'input window, operand 2, single buffered']
    #allocation9 [shape = 'u8[8192]{0}', space=vmem, size = 0x2000, scoped, tag = 'input window, operand 3, single buffered']
    #allocation10 [shape = 's32[1]{0}', space=sflag, size = 0x4, scoped, tag = 'scoped memory for tpu_custom_call.1']
    #allocation11 [shape = 'u8[8192]{0}', space=vmem, size = 0x2000, scoped, tag = 'input window, operand 4, single buffered']
    #allocation12 [shape = 'u8[8192]{0}', space=vmem, size = 0x2000, scoped, tag = 'input window, operand 5, single buffered']
    #allocation13 [shape = 's32[1]{0}', space=sflag, size = 0x4, scoped, tag = 'scoped memory for tpu_custom_call.1']
    #allocation14 [shape = 'u8[16384]{0}', space=vmem, size = 0x4000, scoped, tag = 'output window, operand 0']
    %17 = vsyncpa [#allocation4], 0
    %s18 = scalar_lea.sflag [#allocation4], 1
    %19 = vsyncpa %s18, 0
    %20 = vsyncpa [#allocation7], 0
    %s21 = scalar_lea.sflag [#allocation7], 1
    %22 = vsyncpa %s21, 0
    %23 = vsyncpa [#allocation10], 0
    %24 = vsyncpa [#allocation13], 0
    %25 = vsyncpa [#allocation5], 0
    %s26 = scalar_lea.sflag [#allocation5], 1
    %27 = vsyncpa %s26, 0
    loop: start=0, step=1, limit=4
    $region2: #{tpu_custom_call.1} parent=1 // loop_pre_header
      _
    $region3: #{tpu_custom_call.1} parent=1 // loop_header
      %s29 = sphi 0, %s33
      %p30 = scmp.ge.s32.totalorder %s29, 4
      %s36 = sphi 0, %s48
      %s37 = sphi 0, %s44
      %s38 = sphi 0, %s36
      %s39 = sphi 0, %s37
      %s40 = sphi 0, %s38
      %s41 = sphi 0, %s39
      %s53 = sphi 0, %s55
      %s56 = sphi 0, %s53
      %s57 = sphi 0, %s56
      %s73 = sphi 0, %s57
      %s79 = sphi 0, %s81
      %s82 = sphi 0, %s79
      %s83 = sphi 0, %s82
      %s99 = sphi 0, %s83
      %s103 = sphi 0, %s103
      %s105 = sphi 0, %s103
      %s106 = sphi 0, %s105
      %s120 = sphi 0, %s106
      %s124 = sphi 0, %s124
      %s126 = sphi 0, %s124
      %s127 = sphi 0, %s126
      %s141 = sphi 0, %s127
      %s145 = sphi 0, %s145
      %s147 = sphi 0, %s145
      %s148 = sphi 0, %s147
      %s162 = sphi 0, %s148
      %s166 = sphi 0, %s166
      %s168 = sphi 0, %s166
      %s169 = sphi 0, %s168
      %s183 = sphi 0, %s169
      %s187 = sphi 0, %s187
      %s189 = sphi 0, %s187
      %s190 = sphi 0, %s189
      %s204 = sphi 0, %s190
      %s208 = sphi 0, %s208
      %s210 = sphi 0, %s208
      %s211 = sphi 0, %s210
      %s225 = sphi 0, %s211
      %s229 = sphi 0, %s229
      %s231 = sphi 0, %s229
      %s232 = sphi 0, %s231
      %s246 = sphi 0, %s232
      %s250 = sphi 0, %s250
      %s252 = sphi 0, %s250
      %s253 = sphi 0, %s252
      %s267 = sphi 0, %s253
      %s271 = sphi 0, %s271
      %s273 = sphi 0, %s271
      %s274 = sphi 0, %s273
      %s288 = sphi 0, %s274
      %s292 = sphi 0, %s292
      %s294 = sphi 0, %s292
      %s295 = sphi 0, %s294
      %s309 = sphi 0, %s295
      %s317 = sphi 0, %s319
      %s320 = sphi 0, %s317
      %s321 = sphi 0, %s320
      %s337 = sphi 0, %s321
    $region4: #{tpu_custom_call.1} parent=1 // loop_header_branch
      %32 = sbr.rel (%p30) target = $region8
    $region5: #{tpu_custom_call.1} parent=1 // loop_body
      %s34 = ssub.s32 %s29, 1
      %s35 = ssub.s32 %s29, 2
      %s42 = sadd.s32 1, %s37
      %p43 = scmp.ge.s32.totalorder %s42, 1
      %s44 = scalar_select %p43, 0, %s42
      %s45 = sadd.s32 1, %s36
      %s46 = scalar_select %p43, %s45, %s36
      %p47 = scmp.ge.s32.totalorder %s46, 2
      %s48 = scalar_select %p47, 0, %s46
      %s49 = ssub.s32 %s36, %s48
      %s50 = ssub.s32 %s37, %s44
      %s51 = sor.u32 %s49, %s50
      %p52 = scmp.eq.s32.totalorder %s51, 0
      %s54 = sadd.s32 %s53, 1
      %s55 = scalar_select %p52, %s53, %s54
      %p58 = pneg %p52
      %p59 = scmp.eq.s32.totalorder %s29, 1
      %p60 = por %p58, %p59
      %p61 = scmp.ne.s32.totalorder %s53, %s56
      %p62 = scmp.eq.s32.totalorder %s29, 0
      %p63 = por %p61, %p62
      %p64 = scmp.ne.s32.totalorder %s53, %s56
      %p65 = scmp.eq.s32.totalorder %s34, 1
      %p66 = por %p64, %p65
      %p67 = scmp.ne.s32.totalorder %s56, %s57
      %p68 = scmp.eq.s32.totalorder %s34, 0
      %p69 = por %p67, %p68
      %p70 = scmp.ne.s32.totalorder %s56, %s57
      %p71 = scmp.eq.s32.totalorder %s35, 1
      %p72 = por %p70, %p71
      %p74 = scmp.ne.s32.totalorder %s57, %s73
      %p75 = scmp.eq.s32.totalorder %s35, 0
      %p76 = por %p74, %p75
      %s77 = ssub.s32 %s36, %s48
      %p78 = scmp.eq.s32.totalorder %s77, 0
      %s80 = sadd.s32 %s79, 1
      %s81 = scalar_select %p78, %s79, %s80
      %p84 = pneg %p78
      %p85 = scmp.eq.s32.totalorder %s29, 1
      %p86 = por %p84, %p85
      %p87 = scmp.ne.s32.totalorder %s79, %s82
      %p88 = scmp.eq.s32.totalorder %s29, 0
      %p89 = por %p87, %p88
      %p90 = scmp.ne.s32.totalorder %s79, %s82
      %p91 = scmp.eq.s32.totalorder %s34, 1
      %p92 = por %p90, %p91
      %p93 = scmp.ne.s32.totalorder %s82, %s83
      %p94 = scmp.eq.s32.totalorder %s34, 0
      %p95 = por %p93, %p94
      %p96 = scmp.ne.s32.totalorder %s82, %s83
      %p97 = scmp.eq.s32.totalorder %s35, 1
      %p98 = por %p96, %p97
      %p100 = scmp.ne.s32.totalorder %s83, %s99
      %p101 = scmp.eq.s32.totalorder %s35, 0
      %p102 = por %p100, %p101
      %s104 = sadd.s32 %s103, 1
      %p107 = scmp.eq.s32.totalorder %s29, 1
      %p108 = scmp.ne.s32.totalorder %s103, %s105
      %p109 = scmp.eq.s32.totalorder %s29, 0
      %p110 = por %p108, %p109
      %p111 = scmp.ne.s32.totalorder %s103, %s105
      %p112 = scmp.eq.s32.totalorder %s34, 1
      %p113 = por %p111, %p112
      %p114 = scmp.ne.s32.totalorder %s105, %s106
      %p115 = scmp.eq.s32.totalorder %s34, 0
      %p116 = por %p114, %p115
      %p117 = scmp.ne.s32.totalorder %s105, %s106
      %p118 = scmp.eq.s32.totalorder %s35, 1
      %p119 = por %p117, %p118
      %p121 = scmp.ne.s32.totalorder %s106, %s120
      %p122 = scmp.eq.s32.totalorder %s35, 0
      %p123 = por %p121, %p122
      %s125 = sadd.s32 %s124, 1
      %p128 = scmp.eq.s32.totalorder %s29, 1
      %p129 = scmp.ne.s32.totalorder %s124, %s126
      %p130 = scmp.eq.s32.totalorder %s29, 0
      %p131 = por %p129, %p130
      %p132 = scmp.ne.s32.totalorder %s124, %s126
      %p133 = scmp.eq.s32.totalorder %s34, 1
      %p134 = por %p132, %p133
      %p135 = scmp.ne.s32.totalorder %s126, %s127
      %p136 = scmp.eq.s32.totalorder %s34, 0
      %p137 = por %p135, %p136
      %p138 = scmp.ne.s32.totalorder %s126, %s127
      %p139 = scmp.eq.s32.totalorder %s35, 1
      %p140 = por %p138, %p139
      %p142 = scmp.ne.s32.totalorder %s127, %s141
      %p143 = scmp.eq.s32.totalorder %s35, 0
      %p144 = por %p142, %p143
      %s146 = sadd.s32 %s145, 1
      %p149 = scmp.eq.s32.totalorder %s29, 1
      %p150 = scmp.ne.s32.totalorder %s145, %s147
      %p151 = scmp.eq.s32.totalorder %s29, 0
      %p152 = por %p150, %p151
      %p153 = scmp.ne.s32.totalorder %s145, %s147
      %p154 = scmp.eq.s32.totalorder %s34, 1
      %p155 = por %p153, %p154
      %p156 = scmp.ne.s32.totalorder %s147, %s148
      %p157 = scmp.eq.s32.totalorder %s34, 0
      %p158 = por %p156, %p157
      %p159 = scmp.ne.s32.totalorder %s147, %s148
      %p160 = scmp.eq.s32.totalorder %s35, 1
      %p161 = por %p159, %p160
      %p163 = scmp.ne.s32.totalorder %s148, %s162
      %p164 = scmp.eq.s32.totalorder %s35, 0
      %p165 = por %p163, %p164
      %s167 = sadd.s32 %s166, 1
      %p170 = scmp.eq.s32.totalorder %s29, 1
      %p171 = scmp.ne.s32.totalorder %s166, %s168
      %p172 = scmp.eq.s32.totalorder %s29, 0
      %p173 = por %p171, %p172
      %p174 = scmp.ne.s32.totalorder %s166, %s168
      %p175 = scmp.eq.s32.totalorder %s34, 1
      %p176 = por %p174, %p175
      %p177 = scmp.ne.s32.totalorder %s168, %s169
      %p178 = scmp.eq.s32.totalorder %s34, 0
      %p179 = por %p177, %p178
      %p180 = scmp.ne.s32.totalorder %s168, %s169
      %p181 = scmp.eq.s32.totalorder %s35, 1
      %p182 = por %p180, %p181
      %p184 = scmp.ne.s32.totalorder %s169, %s183
      %p185 = scmp.eq.s32.totalorder %s35, 0
      %p186 = por %p184, %p185
      %s188 = sadd.s32 %s187, 1
      %p191 = scmp.eq.s32.totalorder %s29, 1
      %p192 = scmp.ne.s32.totalorder %s187, %s189
      %p193 = scmp.eq.s32.totalorder %s29, 0
      %p194 = por %p192, %p193
      %p195 = scmp.ne.s32.totalorder %s187, %s189
      %p196 = scmp.eq.s32.totalorder %s34, 1
      %p197 = por %p195, %p196
      %p198 = scmp.ne.s32.totalorder %s189, %s190
      %p199 = scmp.eq.s32.totalorder %s34, 0
      %p200 = por %p198, %p199
      %p201 = scmp.ne.s32.totalorder %s189, %s190
      %p202 = scmp.eq.s32.totalorder %s35, 1
      %p203 = por %p201, %p202
      %p205 = scmp.ne.s32.totalorder %s190, %s204
      %p206 = scmp.eq.s32.totalorder %s35, 0
      %p207 = por %p205, %p206
      %s209 = sadd.s32 %s208, 1
      %p212 = scmp.eq.s32.totalorder %s29, 1
      %p213 = scmp.ne.s32.totalorder %s208, %s210
      %p214 = scmp.eq.s32.totalorder %s29, 0
      %p215 = por %p213, %p214
      %p216 = scmp.ne.s32.totalorder %s208, %s210
      %p217 = scmp.eq.s32.totalorder %s34, 1
      %p218 = por %p216, %p217
      %p219 = scmp.ne.s32.totalorder %s210, %s211
      %p220 = scmp.eq.s32.totalorder %s34, 0
      %p221 = por %p219, %p220
      %p222 = scmp.ne.s32.totalorder %s210, %s211
      %p223 = scmp.eq.s32.totalorder %s35, 1
      %p224 = por %p222, %p223
      %p226 = scmp.ne.s32.totalorder %s211, %s225
      %p227 = scmp.eq.s32.totalorder %s35, 0
      %p228 = por %p226, %p227
      %s230 = sadd.s32 %s229, 1
      %p233 = scmp.eq.s32.totalorder %s29, 1
      %p234 = scmp.ne.s32.totalorder %s229, %s231
      %p235 = scmp.eq.s32.totalorder %s29, 0
      %p236 = por %p234, %p235
      %p237 = scmp.ne.s32.totalorder %s229, %s231
      %p238 = scmp.eq.s32.totalorder %s34, 1
      %p239 = por %p237, %p238
      %p240 = scmp.ne.s32.totalorder %s231, %s232
      %p241 = scmp.eq.s32.totalorder %s34, 0
      %p242 = por %p240, %p241
      %p243 = scmp.ne.s32.totalorder %s231, %s232
      %p244 = scmp.eq.s32.totalorder %s35, 1
      %p245 = por %p243, %p244
      %p247 = scmp.ne.s32.totalorder %s232, %s246
      %p248 = scmp.eq.s32.totalorder %s35, 0
      %p249 = por %p247, %p248
      %s251 = sadd.s32 %s250, 1
      %p254 = scmp.eq.s32.totalorder %s29, 1
      %p255 = scmp.ne.s32.totalorder %s250, %s252
      %p256 = scmp.eq.s32.totalorder %s29, 0
      %p257 = por %p255, %p256
      %p258 = scmp.ne.s32.totalorder %s250, %s252
      %p259 = scmp.eq.s32.totalorder %s34, 1
      %p260 = por %p258, %p259
      %p261 = scmp.ne.s32.totalorder %s252, %s253
      %p262 = scmp.eq.s32.totalorder %s34, 0
      %p263 = por %p261, %p262
      %p264 = scmp.ne.s32.totalorder %s252, %s253
      %p265 = scmp.eq.s32.totalorder %s35, 1
      %p266 = por %p264, %p265
      %p268 = scmp.ne.s32.totalorder %s253, %s267
      %p269 = scmp.eq.s32.totalorder %s35, 0
      %p270 = por %p268, %p269
      %s272 = sadd.s32 %s271, 1
      %p275 = scmp.eq.s32.totalorder %s29, 1
      %p276 = scmp.ne.s32.totalorder %s271, %s273
      %p277 = scmp.eq.s32.totalorder %s29, 0
      %p278 = por %p276, %p277
      %p279 = scmp.ne.s32.totalorder %s271, %s273
      %p280 = scmp.eq.s32.totalorder %s34, 1
      %p281 = por %p279, %p280
      %p282 = scmp.ne.s32.totalorder %s273, %s274
      %p283 = scmp.eq.s32.totalorder %s34, 0
      %p284 = por %p282, %p283
      %p285 = scmp.ne.s32.totalorder %s273, %s274
      %p286 = scmp.eq.s32.totalorder %s35, 1
      %p287 = por %p285, %p286
      %p289 = scmp.ne.s32.totalorder %s274, %s288
      %p290 = scmp.eq.s32.totalorder %s35, 0
      %p291 = por %p289, %p290
      %s293 = sadd.s32 %s292, 1
      %p296 = scmp.eq.s32.totalorder %s29, 1
      %p297 = scmp.ne.s32.totalorder %s292, %s294
      %p298 = scmp.eq.s32.totalorder %s29, 0
      %p299 = por %p297, %p298
      %p300 = scmp.ne.s32.totalorder %s292, %s294
      %p301 = scmp.eq.s32.totalorder %s34, 1
      %p302 = por %p300, %p301
      %p303 = scmp.ne.s32.totalorder %s294, %s295
      %p304 = scmp.eq.s32.totalorder %s34, 0
      %p305 = por %p303, %p304
      %p306 = scmp.ne.s32.totalorder %s294, %s295
      %p307 = scmp.eq.s32.totalorder %s35, 1
      %p308 = por %p306, %p307
      %p310 = scmp.ne.s32.totalorder %s295, %s309
      %p311 = scmp.eq.s32.totalorder %s35, 0
      %p312 = por %p310, %p311
      %s313 = ssub.s32 %s36, %s48
      %s314 = ssub.s32 %s37, %s44
      %s315 = sor.u32 %s313, %s314
      %p316 = scmp.eq.s32.totalorder %s315, 0
      %s318 = sadd.s32 %s317, 1
      %s319 = scalar_select %p316, %s317, %s318
      %p322 = pneg %p316
      %p323 = scmp.eq.s32.totalorder %s29, 1
      %p324 = por %p322, %p323
      %p325 = scmp.ne.s32.totalorder %s317, %s320
      %p326 = scmp.eq.s32.totalorder %s29, 0
      %p327 = por %p325, %p326
      %p328 = scmp.ne.s32.totalorder %s317, %s320
      %p329 = scmp.eq.s32.totalorder %s34, 1
      %p330 = por %p328, %p329
      %p331 = scmp.ne.s32.totalorder %s320, %s321
      %p332 = scmp.eq.s32.totalorder %s34, 0
      %p333 = por %p331, %p332
      %p334 = scmp.ne.s32.totalorder %s320, %s321
      %p335 = scmp.eq.s32.totalorder %s35, 1
      %p336 = por %p334, %p335
      %p338 = scmp.ne.s32.totalorder %s321, %s337
      %p339 = scmp.eq.s32.totalorder %s35, 0
      %p340 = por %p338, %p339
      %p341 = scmp.le.s32.totalorder 1, %s29
      %p342 = scmp.lt.s32.totalorder %s29, 3
      %p343 = pnand %p341, %p342
      %p344 = pneg %p343
      // Predicated region
      $region9: #{tpu_custom_call.1} parent=5 // pred_check
        _
      $region10: #{tpu_custom_call.1} parent=5 // pred_check_branch
        %346 = sbr.rel (%p343) target = $region12
      $region11: #{tpu_custom_call.1} parent=5 // pred_region
        %s347 = ssub.s32 %s29, 1
        // Predicated region
        $region13: #{tpu_custom_call.1} parent=11 // pred_check
          %p348 = pneg %p116
        $region14: #{tpu_custom_call.1} parent=11 // pred_check_branch
          %350 = sbr.rel (%p348) target = $region16
        $region15: #{tpu_custom_call.1} parent=11 // pred_region
          %352 = vsyncadd [#allocation7], 0
          %s353 = sshll.u32 %s2, 4
          %s354 = int_to_ptr.hbm [resolvable:$true] %s353
          %s355 = sshll.u32 [#allocation8], 4
          %s356 = int_to_ptr.vmem [resolvable:$true] %s355
          %361 = dma.hbm_to_vmem [thread:$0]  %s354, 256, %s356, [#allocation7], 64, 64, 4
        $region16: #{tpu_custom_call.1} parent=11 // pred_fallthru
          _
        // Predicated region
        $region17: #{tpu_custom_call.1} parent=11 // pred_check
          %p362 = pneg %p137
        $region18: #{tpu_custom_call.1} parent=11 // pred_check_branch
          %364 = sbr.rel (%p362) target = $region20
        $region19: #{tpu_custom_call.1} parent=11 // pred_region
          %366 = vsyncadd [#allocation10], 0
          %s367 = sshll.u32 %s3, 4
          %s368 = int_to_ptr.hbm [resolvable:$true] %s367
          %s369 = sshll.u32 [#allocation9], 4
          %s370 = int_to_ptr.vmem [resolvable:$true] %s369
          %375 = dma.hbm_to_vmem [thread:$0]  %s368, 256, %s370, [#allocation10], 64, 64, 4
        $region20: #{tpu_custom_call.1} parent=11 // pred_fallthru
          _
        // Predicated region
        $region21: #{tpu_custom_call.1} parent=11 // pred_check
          %p376 = pneg %p158
        $region22: #{tpu_custom_call.1} parent=11 // pred_check_branch
          %378 = sbr.rel (%p376) target = $region24
        $region23: #{tpu_custom_call.1} parent=11 // pred_region
          %380 = vsyncadd [#allocation10], 0
          %s381 = sshll.u32 %s4, 4
          %s382 = int_to_ptr.hbm [resolvable:$true] %s381
          %s383 = sshll.u32 [#allocation11], 4
          %s384 = int_to_ptr.vmem [resolvable:$true] %s383
          %389 = dma.hbm_to_vmem [thread:$0]  %s382, 256, %s384, [#allocation10], 64, 64, 4
        $region24: #{tpu_custom_call.1} parent=11 // pred_fallthru
          _
        // Predicated region
        $region25: #{tpu_custom_call.1} parent=11 // pred_check
          %p390 = pneg %p179
        $region26: #{tpu_custom_call.1} parent=11 // pred_check_branch
          %392 = sbr.rel (%p390) target = $region28
        $region27: #{tpu_custom_call.1} parent=11 // pred_region
          %394 = vsyncadd [#allocation13], 0
          %s395 = sshll.u32 %s5, 4
          %s396 = int_to_ptr.hbm [resolvable:$true] %s395
          %s397 = sshll.u32 [#allocation12], 4
          %s398 = int_to_ptr.vmem [resolvable:$true] %s397
          %403 = dma.hbm_to_vmem [thread:$0]  %s396, 256, %s398, [#allocation13], 64, 64, 4
        $region28: #{tpu_custom_call.1} parent=11 // pred_fallthru
          _
        // Predicated region
        $region29: #{tpu_custom_call.1} parent=11 // pred_check
          %p404 = pneg %p200
        $region30: #{tpu_custom_call.1} parent=11 // pred_check_branch
          %406 = sbr.rel (%p404) target = $region32
        $region31: #{tpu_custom_call.1} parent=11 // pred_region
          _
        $region32: #{tpu_custom_call.1} parent=11 // pred_fallthru
          _
        // Predicated region
        $region33: #{tpu_custom_call.1} parent=11 // pred_check
          %p407 = pneg %p221
        $region34: #{tpu_custom_call.1} parent=11 // pred_check_branch
          %409 = sbr.rel (%p407) target = $region36
        $region35: #{tpu_custom_call.1} parent=11 // pred_region
          _
        $region36: #{tpu_custom_call.1} parent=11 // pred_fallthru
          _
        // Predicated region
        $region37: #{tpu_custom_call.1} parent=11 // pred_check
          %p410 = pneg %p242
        $region38: #{tpu_custom_call.1} parent=11 // pred_check_branch
          %412 = sbr.rel (%p410) target = $region40
        $region39: #{tpu_custom_call.1} parent=11 // pred_region
          _
        $region40: #{tpu_custom_call.1} parent=11 // pred_fallthru
          _
        // Predicated region
        $region41: #{tpu_custom_call.1} parent=11 // pred_check
          %p413 = pneg %p263
        $region42: #{tpu_custom_call.1} parent=11 // pred_check_branch
          %415 = sbr.rel (%p413) target = $region44
        $region43: #{tpu_custom_call.1} parent=11 // pred_region
          _
        $region44: #{tpu_custom_call.1} parent=11 // pred_fallthru
          _
        // Predicated region
        $region45: #{tpu_custom_call.1} parent=11 // pred_check
          %p416 = pneg %p284
        $region46: #{tpu_custom_call.1} parent=11 // pred_check_branch
          %418 = sbr.rel (%p416) target = $region48
        $region47: #{tpu_custom_call.1} parent=11 // pred_region
          _
        $region48: #{tpu_custom_call.1} parent=11 // pred_fallthru
          _
        // Predicated region
        $region49: #{tpu_custom_call.1} parent=11 // pred_check
          %p419 = pneg %p305
        $region50: #{tpu_custom_call.1} parent=11 // pred_check_branch
          %421 = sbr.rel (%p419) target = $region52
        $region51: #{tpu_custom_call.1} parent=11 // pred_region
          _
        $region52: #{tpu_custom_call.1} parent=11 // pred_fallthru
          _
      $region12: #{tpu_custom_call.1} parent=5 // pred_fallthru
        _
      %p422 = scmp.lt.s32.totalorder %s29, 2
      // Predicated region
      $region53: #{tpu_custom_call.1} parent=5 // pred_check
        %p423 = pneg %p422
      $region54: #{tpu_custom_call.1} parent=5 // pred_check_branch
        %425 = sbr.rel (%p423) target = $region56
      $region55: #{tpu_custom_call.1} parent=5 // pred_region
        // Predicated region
        $region57: #{tpu_custom_call.1} parent=55 // pred_check
          %p426 = pneg %p63
        $region58: #{tpu_custom_call.1} parent=55 // pred_check_branch
          %428 = sbr.rel (%p426) target = $region60
        $region59: #{tpu_custom_call.1} parent=55 // pred_region
          %s429 = sand.u32 %s53, 1
          %s430 = scalar_lea.sflag [#allocation4], %s429
          %s431 = sand.u32 %s53, 1
          %s432 = smul.addr %s431, 16
          %s433 = scalar_lea.vmem [#allocation3], %s432
          %s434 = smul.u32 2, %s37
          %436 = vsyncadd %s430, 0
          %s437 = smul.addr %s36, 2
          %s438 = sadd.s32 %s434, %s437
          %s439 = smul.addr %s438, 8
          %s440 = scalar_lea.hbm %s0, %s439
          %s441 = sshll.u32 %s440, 4
          %s442 = int_to_ptr.hbm [resolvable:$true] %s441
          %s443 = sshll.u32 %s433, 4
          %s444 = int_to_ptr.vmem [resolvable:$true] %s443
          %449 = dma.hbm_to_vmem [thread:$0]  %s442, 256, %s444, %s430, 128, 128, 8
        $region60: #{tpu_custom_call.1} parent=55 // pred_fallthru
          _
        // Predicated region
        $region61: #{tpu_custom_call.1} parent=55 // pred_check
          %p450 = pneg %p89
        $region62: #{tpu_custom_call.1} parent=55 // pred_check_branch
          %452 = sbr.rel (%p450) target = $region64
        $region63: #{tpu_custom_call.1} parent=55 // pred_region
          %s453 = sand.u32 %s29, 1
          %s454 = scalar_lea.sflag [#allocation7], %s453
          %s455 = sand.u32 %s79, 1
          %s456 = smul.addr %s455, 16
          %s457 = scalar_lea.vmem [#allocation6], %s456
          %459 = vsyncadd %s454, 0
          %s460 = smul.addr %s36, 2
          %s461 = smul.addr %s460, 8
          %s462 = scalar_lea.hbm %s1, %s461
          %s463 = sshll.u32 %s462, 4
          %s464 = int_to_ptr.hbm [resolvable:$true] %s463
          %s465 = sshll.u32 %s457, 4
          %s466 = int_to_ptr.vmem [resolvable:$true] %s465
          %471 = dma.hbm_to_vmem [thread:$0]  %s464, 256, %s466, %s454, 128, 128, 8
        $region64: #{tpu_custom_call.1} parent=55 // pred_fallthru
          _
      $region56: #{tpu_custom_call.1} parent=5 // pred_fallthru
        _
      %p472 = scmp.le.s32.totalorder 1, %s29
      %p473 = scmp.lt.s32.totalorder %s29, 3
      %p474 = pnand %p472, %p473
      %p475 = pneg %p474
      // Predicated region
      $region65: #{tpu_custom_call.1} parent=5 // pred_check
        _
      $region66: #{tpu_custom_call.1} parent=5 // pred_check_branch
        %477 = sbr.rel (%p474) target = $region68
      $region67: #{tpu_custom_call.1} parent=5 // pred_region
        %s478 = ssub.s32 %s29, 1
        %s479 = sand.u32 %s56, 1
        %s480 = scalar_lea.sflag [#allocation4], %s479
        %s481 = sand.u32 %s56, 1
        %s482 = smul.addr %s481, 16
        %s483 = scalar_lea.vmem [#allocation3], %s482
        // Predicated region
        $region69: #{tpu_custom_call.1} parent=67 // pred_check
          %p484 = pneg %p69
        $region70: #{tpu_custom_call.1} parent=67 // pred_check_branch
          %486 = sbr.rel (%p484) target = $region72
        $region71: #{tpu_custom_call.1} parent=67 // pred_region
          %488 = dma.done %s480, 256
        $region72: #{tpu_custom_call.1} parent=67 // pred_fallthru
          _
        %s489 = sand.u32 %s34, 1
        %s490 = scalar_lea.sflag [#allocation7], %s489
        %s491 = sand.u32 %s82, 1
        %s492 = smul.addr %s491, 16
        %s493 = scalar_lea.vmem [#allocation6], %s492
        // Predicated region
        $region73: #{tpu_custom_call.1} parent=67 // pred_check
          %p494 = pneg %p95
        $region74: #{tpu_custom_call.1} parent=67 // pred_check_branch
          %496 = sbr.rel (%p494) target = $region76
        $region75: #{tpu_custom_call.1} parent=67 // pred_region
          %498 = dma.done %s490, 256
        $region76: #{tpu_custom_call.1} parent=67 // pred_fallthru
          _
        // Predicated region
        $region77: #{tpu_custom_call.1} parent=67 // pred_check
          %p499 = pneg %p116
        $region78: #{tpu_custom_call.1} parent=67 // pred_check_branch
          %501 = sbr.rel (%p499) target = $region80
        $region79: #{tpu_custom_call.1} parent=67 // pred_region
          %503 = dma.done [#allocation7], 256
        $region80: #{tpu_custom_call.1} parent=67 // pred_fallthru
          _
        // Predicated region
        $region81: #{tpu_custom_call.1} parent=67 // pred_check
          %p504 = pneg %p137
        $region82: #{tpu_custom_call.1} parent=67 // pred_check_branch
          %506 = sbr.rel (%p504) target = $region84
        $region83: #{tpu_custom_call.1} parent=67 // pred_region
          %508 = dma.done [#allocation10], 256
        $region84: #{tpu_custom_call.1} parent=67 // pred_fallthru
          _
        // Predicated region
        $region85: #{tpu_custom_call.1} parent=67 // pred_check
          %p509 = pneg %p158
        $region86: #{tpu_custom_call.1} parent=67 // pred_check_branch
          %511 = sbr.rel (%p509) target = $region88
        $region87: #{tpu_custom_call.1} parent=67 // pred_region
          %513 = dma.done [#allocation10], 256
        $region88: #{tpu_custom_call.1} parent=67 // pred_fallthru
          _
        // Predicated region
        $region89: #{tpu_custom_call.1} parent=67 // pred_check
          %p514 = pneg %p179
        $region90: #{tpu_custom_call.1} parent=67 // pred_check_branch
          %516 = sbr.rel (%p514) target = $region92
        $region91: #{tpu_custom_call.1} parent=67 // pred_region
          %518 = dma.done [#allocation13], 256
        $region92: #{tpu_custom_call.1} parent=67 // pred_fallthru
          _
        %s519 = sand.u32 %s56, 1
        %s520 = scalar_lea.sflag [#allocation4], %s519
        %s521 = sand.u32 %s56, 1
        %s522 = smul.addr %s521, 16
        %s523 = scalar_lea.vmem [#allocation3], %s522
        %p524 = pneg %p69
        %p525 = pneg %p66
        %s526 = sand.u32 %s34, 1
        %s527 = scalar_lea.sflag [#allocation7], %s526
        %s528 = sand.u32 %s82, 1
        %s529 = smul.addr %s528, 16
        %s530 = scalar_lea.vmem [#allocation6], %s529
        %p531 = pneg %p95
        %p532 = pneg %p92
        %p533 = pneg %p116
        %p534 = pneg %p113
        %p535 = pneg %p137
        %p536 = pneg %p134
        %p537 = pneg %p158
        %p538 = pneg %p155
        %p539 = pneg %p179
        %p540 = pneg %p176
        %p541 = pneg %p200
        %p542 = pneg %p197
        %p543 = pneg %p221
        %p544 = pneg %p218
        %p545 = pneg %p242
        %p546 = pneg %p239
        %p547 = pneg %p263
        %p548 = pneg %p260
        %p549 = pneg %p284
        %p550 = pneg %p281
        %p551 = pneg %p305
        %p552 = pneg %p302
        %p553 = pneg %p333
        %p554 = pneg %p330
        %s555 = sand.u32 %s320, 1
        %s556 = scalar_lea.sflag [#allocation5], %s555
        %s557 = sand.u32 %s320, 1
        %s558 = smul.addr %s557, 16
        %s559 = scalar_lea.vmem [#allocation14], %s558
        %s560 = smul.u32 2, %s39
        %s561 = smul.u32 2, %s39
        %v563 = vld [vmem:[%s483] sm:$0xff]
        %v564 = vld [vmem:[%s483 + $0x8] sm:$0xff]
        %v565 = vld [vmem:[%s493] sm:$0xff]
        %v566 = vld [vmem:[%s493 + $0x8] sm:$0xff]
        %v567 = vpack.c.bf16 %v564, %v563
        %v568 = vpack.c.bf16 %v566, %v565
        %v569 = vld [vmem:[#allocation8] sm:$0xf]
        %v570 = vld [vmem:[#allocation8 + $0x4] sm:$0xf]
        %v571 = vld [vmem:[#allocation8 + $0x8] sm:$0xf]
        %v572 = vld [vmem:[#allocation8 + $0xc] sm:$0xf]
        %v573 = vld [vmem:[%s6] sm:$0x1]
        %v575 = vperm.slane %v573, 0
        %v581 = vunpack.c.l.b16 %v569
        %v582 = vunpack.c.l.b16 %v570
        %v583 = vunpack.c.l.b16 %v571
        %v584 = vunpack.c.l.b16 %v572
        %v585 = vpack.c.b16 %v582, %v581
        %v586 = vpack.c.b16 %v584, %v583
        %vm589 = vcmask 261120
        %v591 = vsel %vm589, %v567, 0
        %593 = vmatpush.bf16.msra.mxu0 0
        %594 = vmatpush.bf16.msra.mxu0 0
        %595 = vmatpush.bf16.msra.mxu0 0
        %596 = vmatpush.bf16.msra.mxu0 0
        %597 = vmatpush.bf16.msra.mxu0 0
        %598 = vmatpush.bf16.msra.mxu0 0
        %599 = vmatpush.bf16.msra.mxu0 %v586
        %600 = vmatpush.bf16.msra.mxu0 %v585
        %601 = vmatmul.bf16.gmra.mxu0 %v591
        %v602 = vpop.f32.mrf.mxu0
        %v603 = vadd.f32 %v575, %v602
        %v604 = vpop.f32.mrf.mxu0
        %v605 = vadd.f32 %v575, %v604
        %606 = vdwg.mxu0
        %v607 = vld [vmem:[#allocation9] sm:$0xf]
        %v608 = vld [vmem:[#allocation9 + $0x4] sm:$0xf]
        %v609 = vld [vmem:[#allocation9 + $0x8] sm:$0xf]
        %v610 = vld [vmem:[#allocation9 + $0xc] sm:$0xf]
        %v611 = vld [vmem:[%s7] sm:$0x1]
        %v613 = vperm.slane %v611, 0
        %v619 = vunpack.c.l.b16 %v607
        %v620 = vunpack.c.l.b16 %v608
        %v621 = vunpack.c.l.b16 %v609
        %v622 = vunpack.c.l.b16 %v610
        %v623 = vpack.c.b16 %v620, %v619
        %v624 = vpack.c.b16 %v622, %v621
        %v628 = vsel %vm589, %v568, 0
        %630 = vmatpush.bf16.msra.mxu0 0
        %631 = vmatpush.bf16.msra.mxu0 0
        %632 = vmatpush.bf16.msra.mxu0 0
        %633 = vmatpush.bf16.msra.mxu0 0
        %634 = vmatpush.bf16.msra.mxu0 0
        %635 = vmatpush.bf16.msra.mxu0 0
        %636 = vmatpush.bf16.msra.mxu0 %v624
        %637 = vmatpush.bf16.msra.mxu0 %v623
        %638 = vmatmul.bf16.gmra.mxu0 %v628
        %v639 = vpop.f32.mrf.mxu0
        %v640 = vadd.f32 %v613, %v639
        %v641 = vpop.f32.mrf.mxu0
        %v642 = vadd.f32 %v613, %v641
        %643 = vdwg.mxu0
        %v644 = vld [vmem:[#allocation11] sm:$0xf]
        %v645 = vld [vmem:[#allocation11 + $0x4] sm:$0xf]
        %v646 = vld [vmem:[#allocation11 + $0x8] sm:$0xf]
        %v647 = vld [vmem:[#allocation11 + $0xc] sm:$0xf]
        %v648 = vld [vmem:[%s8] sm:$0x1]
        %v650 = vperm.slane %v648, 0
        %v656 = vunpack.c.l.b16 %v644
        %v657 = vunpack.c.l.b16 %v645
        %v658 = vunpack.c.l.b16 %v646
        %v659 = vunpack.c.l.b16 %v647
        %v660 = vpack.c.b16 %v657, %v656
        %v661 = vpack.c.b16 %v659, %v658
        %664 = vmatpush.bf16.msra.mxu0 0
        %665 = vmatpush.bf16.msra.mxu0 0
        %666 = vmatpush.bf16.msra.mxu0 0
        %667 = vmatpush.bf16.msra.mxu0 0
        %668 = vmatpush.bf16.msra.mxu0 0
        %669 = vmatpush.bf16.msra.mxu0 0
        %670 = vmatpush.bf16.msra.mxu0 %v661
        %671 = vmatpush.bf16.msra.mxu0 %v660
        %672 = vmatmul.bf16.gmra.mxu0 %v628
        %v673 = vpop.f32.mrf.mxu0
        %v674 = vadd.f32 %v650, %v673
        %v675 = vpop.f32.mrf.mxu0
        %v676 = vadd.f32 %v650, %v675
        %677 = vdwg.mxu0
        %v678 = vmul.f32 %v603, 0.35355338
        %v679 = vmul.f32 %v605, 0.35355338
        %v680 = vpack.c.bf16 %v678, %v678
        %v681 = vpack.c.bf16 %v679, %v679
        %v682 = vpack.c.bf16 %v640, %v640
        %v683 = vpack.c.bf16 %v642, %v642
        %v684 = vpack.c.bf16 %v674, %v674
        %v685 = vpack.c.bf16 %v676, %v676
        %v688 = vunpack.c.l.b16 %v680
        %v689 = vunpack.c.l.b16 %v681
        %v690 = vpack.c.b16 %v689, %v688
        %v693 = vunpack.c.l.b16 %v682
        %v694 = vunpack.c.l.b16 %v683
        %v695 = vpack.c.b16 %v694, %v693
        %vm696 = vcmask 64512
        %v698 = vsel %vm696, %v690, 0
        %v701 = vsel %vm696, %v695, 0
        %703 = vmatpush.bf16.xpose.msra.mxu0 0
        %704 = vmatpush.bf16.xpose.msra.mxu0 0
        %705 = vmatpush.bf16.xpose.msra.mxu0 0
        %706 = vmatpush.bf16.xpose.msra.mxu0 0
        %707 = vmatpush.bf16.xpose.msra.mxu0 0
        %708 = vmatpush.bf16.xpose.msra.mxu0 0
        %709 = vmatpush.bf16.xpose.msra.mxu0 0
        %710 = vmatpush.bf16.xpose.msra.mxu0 %v701
        %711 = vmatmul.bf16.gmra.mxu0 %v698
        %v712 = vpop.f32.mrf.mxu0
        %v713 = vadd.f32 0.0, %v712
        %v714 = vpop.f32.mrf.mxu0
        %v715 = vadd.f32 0.0, %v714
        %716 = vdwg.mxu0
        %vm717 = vcmask 130048
        %v718 = vsel %vm717, %v713, -inf
        %719 = vmax.xlane.f32.xlu0 %v718
        %v720 = vpop.xlane.xlu0 %719
        %v721 = vsel %vm717, %v715, -inf
        %722 = vmax.xlane.f32.xlu0 %v721
        %v723 = vpop.xlane.xlu0 %722
        %v724 = vsub.f32 %v713, %v720
        %v725 = vsub.f32 %v715, %v723
        %v726 = vmul.f32 %v724, 1.442695
        %v727 = vpow.pop %v726
        %v728 = vmul.f32 %v725, 1.442695
        %v729 = vpow.pop %v728
        %v730 = vsel %vm717, %v727, 0.0
        %731 = vadd.xlane.f32.xlu0 %v730
        %v732 = vpop.xlane.xlu0 %731
        %v733 = vsel %vm717, %v729, 0.0
        %734 = vadd.xlane.f32.xlu0 %v733
        %v735 = vpop.xlane.xlu0 %734
        %v736 = vrcp.pop %v732
        %v737 = vmul.f32 %v732, %v736
        %v738 = vsub.f32 1.0, %v737
        %v739 = vmul.f32 %v736, %v738
        %v740 = vadd.f32 %v736, %v739
        %vm741 = vweird.f32 %v732
        %vm742 = vweird.f32 %v736
        %vm743 = vmor %vm741, %vm742
        %v744 = vsel %vm743, %v736, %v740
        %v745 = vand.u32 2147483647, %v732
        %vm746 = vcmp.eq.f32.partialorder %v745, 8.507059e+37
        %v747 = vand.u32 %v732, 2147483648
        %v748 = vor.u32 1.1754944e-38, %v747
        %v749 = vsel %vm746, %v748, %v744
        %v750 = vmul.f32 1.0, %v749
        %v751 = vrcp.pop %v735
        %v752 = vmul.f32 %v735, %v751
        %v753 = vsub.f32 1.0, %v752
        %v754 = vmul.f32 %v751, %v753
        %v755 = vadd.f32 %v751, %v754
        %vm756 = vweird.f32 %v735
        %vm757 = vweird.f32 %v751
        %vm758 = vmor %vm756, %vm757
        %v759 = vsel %vm758, %v751, %v755
        %v760 = vand.u32 2147483647, %v735
        %vm761 = vcmp.eq.f32.partialorder %v760, 8.507059e+37
        %v762 = vand.u32 %v735, 2147483648
        %v763 = vor.u32 1.1754944e-38, %v762
        %v764 = vsel %vm761, %v763, %v759
        %v765 = vmul.f32 1.0, %v764
        %v766 = vpack.c.bf16 %v729, %v727
        %v769 = vunpack.c.l.b16 %v684
        %v770 = vunpack.c.l.b16 %v685
        %v771 = vpack.c.b16 %v770, %v769
        %v774 = vsel %vm717, %v766, 0
        %776 = vmatpush.bf16.msra.mxu0 0
        %777 = vmatpush.bf16.msra.mxu0 0
        %778 = vmatpush.bf16.msra.mxu0 0
        %779 = vmatpush.bf16.msra.mxu0 0
        %780 = vmatpush.bf16.msra.mxu0 0
        %781 = vmatpush.bf16.msra.mxu0 0
        %782 = vmatpush.bf16.msra.mxu0 0
        %783 = vmatpush.bf16.msra.mxu0 %v771
        %784 = vmatmul.bf16.gmra.mxu0 %v774
        %v785 = vpop.f32.mrf.mxu0
        %v786 = vadd.f32 0.0, %v785
        %v787 = vpop.f32.mrf.mxu0
        %v788 = vadd.f32 0.0, %v787
        %789 = vdwg.mxu0
        %v790 = vmul.f32 %v786, %v750
        %v791 = vmul.f32 %v788, %v765
        %792 = vst.msk [vmem:[#allocation2] sm:$0xff] %vm696, %v790
        %793 = vst.msk [vmem:[#allocation2 + $0x8] sm:$0xff] %vm696, %v791
        %794 = vrot.lane.b32.xlu0 %v690, 120
        %v795 = vpop.permute.xlu0 %794
        %796 = vrot.lane.b32.xlu0 %v695, 120
        %v797 = vpop.permute.xlu0 %796
        %v799 = vsel %vm696, %v795, 0
        %v802 = vsel %vm696, %v797, 0
        %804 = vmatpush.bf16.xpose.msra.mxu0 0
        %805 = vmatpush.bf16.xpose.msra.mxu0 0
        %806 = vmatpush.bf16.xpose.msra.mxu0 0
        %807 = vmatpush.bf16.xpose.msra.mxu0 0
        %808 = vmatpush.bf16.xpose.msra.mxu0 0
        %809 = vmatpush.bf16.xpose.msra.mxu0 0
        %810 = vmatpush.bf16.xpose.msra.mxu0 0
        %811 = vmatpush.bf16.xpose.msra.mxu0 %v802
        %812 = vmatmul.bf16.gmra.mxu0 %v799
        %v813 = vpop.f32.mrf.mxu0
        %v814 = vadd.f32 0.0, %v813
        %v815 = vpop.f32.mrf.mxu0
        %v816 = vadd.f32 0.0, %v815
        %817 = vdwg.mxu0
        %v818 = vsel %vm717, %v814, -inf
        %819 = vmax.xlane.f32.xlu0 %v818
        %v820 = vpop.xlane.xlu0 %819
        %v821 = vsel %vm717, %v816, -inf
        %822 = vmax.xlane.f32.xlu0 %v821
        %v823 = vpop.xlane.xlu0 %822
        %v824 = vsub.f32 %v814, %v820
        %v825 = vsub.f32 %v816, %v823
        %v826 = vmul.f32 %v824, 1.442695
        %v827 = vpow.pop %v826
        %v828 = vmul.f32 %v825, 1.442695
        %v829 = vpow.pop %v828
        %v830 = vsel %vm717, %v827, 0.0
        %831 = vadd.xlane.f32.xlu0 %v830
        %v832 = vpop.xlane.xlu0 %831
        %v833 = vsel %vm717, %v829, 0.0
        %834 = vadd.xlane.f32.xlu0 %v833
        %v835 = vpop.xlane.xlu0 %834
        %v836 = vrcp.pop %v832
        %v837 = vmul.f32 %v832, %v836
        %v838 = vsub.f32 1.0, %v837
        %v839 = vmul.f32 %v836, %v838
        %v840 = vadd.f32 %v836, %v839
        %vm841 = vweird.f32 %v832
        %vm842 = vweird.f32 %v836
        %vm843 = vmor %vm841, %vm842
        %v844 = vsel %vm843, %v836, %v840
        %v845 = vand.u32 2147483647, %v832
        %vm846 = vcmp.eq.f32.partialorder %v845, 8.507059e+37
        %v847 = vand.u32 %v832, 2147483648
        %v848 = vor.u32 1.1754944e-38, %v847
        %v849 = vsel %vm846, %v848, %v844
        %v850 = vmul.f32 1.0, %v849
        %v851 = vrcp.pop %v835
        %v852 = vmul.f32 %v835, %v851
        %v853 = vsub.f32 1.0, %v852
        %v854 = vmul.f32 %v851, %v853
        %v855 = vadd.f32 %v851, %v854
        %vm856 = vweird.f32 %v835
        %vm857 = vweird.f32 %v851
        %vm858 = vmor %vm856, %vm857
        %v859 = vsel %vm858, %v851, %v855
        %v860 = vand.u32 2147483647, %v835
        %vm861 = vcmp.eq.f32.partialorder %v860, 8.507059e+37
        %v862 = vand.u32 %v835, 2147483648
        %v863 = vor.u32 1.1754944e-38, %v862
        %v864 = vsel %vm861, %v863, %v859
        %v865 = vmul.f32 1.0, %v864
        %v866 = vpack.c.bf16 %v829, %v827
        %867 = vrot.lane.b32.xlu0 %v771, 120
        %v868 = vpop.permute.xlu0 %867
        %v871 = vsel %vm717, %v866, 0
        %873 = vmatpush.bf16.msra.mxu0 0
        %874 = vmatpush.bf16.msra.mxu0 0
        %875 = vmatpush.bf16.msra.mxu0 0
        %876 = vmatpush.bf16.msra.mxu0 0
        %877 = vmatpush.bf16.msra.mxu0 0
        %878 = vmatpush.bf16.msra.mxu0 0
        %879 = vmatpush.bf16.msra.mxu0 0
        %880 = vmatpush.bf16.msra.mxu0 %v868
        %881 = vmatmul.bf16.gmra.mxu0 %v871
        %v882 = vpop.f32.mrf.mxu0
        %v883 = vadd.f32 0.0, %v882
        %v884 = vpop.f32.mrf.mxu0
        %v885 = vadd.f32 0.0, %v884
        %886 = vdwg.mxu0
        %v887 = vmul.f32 %v883, %v850
        %v888 = vmul.f32 %v885, %v865
        %891 = vrot.lane.b32.xlu0 %v887, 8
        %v892 = vpop.permute.xlu0 %891
        %893 = vrot.lane.b32.xlu0 %v888, 8
        %v894 = vpop.permute.xlu0 %893
        %vm897 = vcmask 130112
        %898 = vst.msk [vmem:[#allocation2] sm:$0xff] %vm897, %v892
        %899 = vst.msk [vmem:[#allocation2 + $0x8] sm:$0xff] %vm897, %v894
        %900 = vrot.lane.b32.xlu0 %v690, 112
        %v901 = vpop.permute.xlu0 %900
        %902 = vrot.lane.b32.xlu0 %v695, 112
        %v903 = vpop.permute.xlu0 %902
        %v905 = vsel %vm696, %v901, 0
        %v908 = vsel %vm696, %v903, 0
        %910 = vmatpush.bf16.xpose.msra.mxu0 0
        %911 = vmatpush.bf16.xpose.msra.mxu0 0
        %912 = vmatpush.bf16.xpose.msra.mxu0 0
        %913 = vmatpush.bf16.xpose.msra.mxu0 0
        %914 = vmatpush.bf16.xpose.msra.mxu0 0
        %915 = vmatpush.bf16.xpose.msra.mxu0 0
        %916 = vmatpush.bf16.xpose.msra.mxu0 0
        %917 = vmatpush.bf16.xpose.msra.mxu0 %v908
        %918 = vmatmul.bf16.gmra.mxu0 %v905
        %v919 = vpop.f32.mrf.mxu0
        %v920 = vadd.f32 0.0, %v919
        %v921 = vpop.f32.mrf.mxu0
        %v922 = vadd.f32 0.0, %v921
        %923 = vdwg.mxu0
        %v924 = vsel %vm717, %v920, -inf
        %925 = vmax.xlane.f32.xlu0 %v924
        %v926 = vpop.xlane.xlu0 %925
        %v927 = vsel %vm717, %v922, -inf
        %928 = vmax.xlane.f32.xlu0 %v927
        %v929 = vpop.xlane.xlu0 %928
        %v930 = vsub.f32 %v920, %v926
        %v931 = vsub.f32 %v922, %v929
        %v932 = vmul.f32 %v930, 1.442695
        %v933 = vpow.pop %v932
        %v934 = vmul.f32 %v931, 1.442695
        %v935 = vpow.pop %v934
        %v936 = vsel %vm717, %v933, 0.0
        %937 = vadd.xlane.f32.xlu0 %v936
        %v938 = vpop.xlane.xlu0 %937
        %v939 = vsel %vm717, %v935, 0.0
        %940 = vadd.xlane.f32.xlu0 %v939
        %v941 = vpop.xlane.xlu0 %940
        %v942 = vrcp.pop %v938
        %v943 = vmul.f32 %v938, %v942
        %v944 = vsub.f32 1.0, %v943
        %v945 = vmul.f32 %v942, %v944
        %v946 = vadd.f32 %v942, %v945
        %vm947 = vweird.f32 %v938
        %vm948 = vweird.f32 %v942
        %vm949 = vmor %vm947, %vm948
        %v950 = vsel %vm949, %v942, %v946
        %v951 = vand.u32 2147483647, %v938
        %vm952 = vcmp.eq.f32.partialorder %v951, 8.507059e+37
        %v953 = vand.u32 %v938, 2147483648
        %v954 = vor.u32 1.1754944e-38, %v953
        %v955 = vsel %vm952, %v954, %v950
        %v956 = vmul.f32 1.0, %v955
        %v957 = vrcp.pop %v941
        %v958 = vmul.f32 %v941, %v957
        %v959 = vsub.f32 1.0, %v958
        %v960 = vmul.f32 %v957, %v959
        %v961 = vadd.f32 %v957, %v960
        %vm962 = vweird.f32 %v941
        %vm963 = vweird.f32 %v957
        %vm964 = vmor %vm962, %vm963
        %v965 = vsel %vm964, %v957, %v961
        %v966 = vand.u32 2147483647, %v941
        %vm967 = vcmp.eq.f32.partialorder %v966, 8.507059e+37
        %v968 = vand.u32 %v941, 2147483648
        %v969 = vor.u32 1.1754944e-38, %v968
        %v970 = vsel %vm967, %v969, %v965
        %v971 = vmul.f32 1.0, %v970
        %v972 = vpack.c.bf16 %v935, %v933
        %973 = vrot.lane.b32.xlu0 %v771, 112
        %v974 = vpop.permute.xlu0 %973
        %v977 = vsel %vm717, %v972, 0
        %979 = vmatpush.bf16.msra.mxu0 0
        %980 = vmatpush.bf16.msra.mxu0 0
        %981 = vmatpush.bf16.msra.mxu0 0
        %982 = vmatpush.bf16.msra.mxu0 0
        %983 = vmatpush.bf16.msra.mxu0 0
        %984 = vmatpush.bf16.msra.mxu0 0
        %985 = vmatpush.bf16.msra.mxu0 0
        %986 = vmatpush.bf16.msra.mxu0 %v974
        %987 = vmatmul.bf16.gmra.mxu0 %v977
        %v988 = vpop.f32.mrf.mxu0
        %v989 = vadd.f32 0.0, %v988
        %v990 = vpop.f32.mrf.mxu0
        %v991 = vadd.f32 0.0, %v990
        %992 = vdwg.mxu0
        %v993 = vmul.f32 %v989, %v956
        %v994 = vmul.f32 %v991, %v971
        %997 = vrot.lane.b32.xlu0 %v993, 16
        %v998 = vpop.permute.xlu0 %997
        %999 = vrot.lane.b32.xlu0 %v994, 16
        %v1000 = vpop.permute.xlu0 %999
        %vm1003 = vcmask 195712
        %1004 = vst.msk [vmem:[#allocation2] sm:$0xff] %vm1003, %v998
        %1005 = vst.msk [vmem:[#allocation2 + $0x8] sm:$0xff] %vm1003, %v1000
        %1006 = vrot.lane.b32.xlu0 %v690, 104
        %v1007 = vpop.permute.xlu0 %1006
        %1008 = vrot.lane.b32.xlu0 %v695, 104
        %v1009 = vpop.permute.xlu0 %1008
        %v1011 = vsel %vm696, %v1007, 0
        %v1014 = vsel %vm696, %v1009, 0
        %1016 = vmatpush.bf16.xpose.msra.mxu0 0
        %1017 = vmatpush.bf16.xpose.msra.mxu0 0
        %1018 = vmatpush.bf16.xpose.msra.mxu0 0
        %1019 = vmatpush.bf16.xpose.msra.mxu0 0
        %1020 = vmatpush.bf16.xpose.msra.mxu0 0
        %1021 = vmatpush.bf16.xpose.msra.mxu0 0
        %1022 = vmatpush.bf16.xpose.msra.mxu0 0
        %1023 = vmatpush.bf16.xpose.msra.mxu0 %v1014
        %1024 = vmatmul.bf16.gmra.mxu0 %v1011
        %v1025 = vpop.f32.mrf.mxu0
        %v1026 = vadd.f32 0.0, %v1025
        %v1027 = vpop.f32.mrf.mxu0
        %v1028 = vadd.f32 0.0, %v1027
        %1029 = vdwg.mxu0
        %v1030 = vsel %vm717, %v1026, -inf
        %1031 = vmax.xlane.f32.xlu0 %v1030
        %v1032 = vpop.xlane.xlu0 %1031
        %v1033 = vsel %vm717, %v1028, -inf
        %1034 = vmax.xlane.f32.xlu0 %v1033
        %v1035 = vpop.xlane.xlu0 %1034
        %v1036 = vsub.f32 %v1026, %v1032
        %v1037 = vsub.f32 %v1028, %v1035
        %v1038 = vmul.f32 %v1036, 1.442695
        %v1039 = vpow.pop %v1038
        %v1040 = vmul.f32 %v1037, 1.442695
        %v1041 = vpow.pop %v1040
        %v1042 = vsel %vm717, %v1039, 0.0
        %1043 = vadd.xlane.f32.xlu0 %v1042
        %v1044 = vpop.xlane.xlu0 %1043
        %v1045 = vsel %vm717, %v1041, 0.0
        %1046 = vadd.xlane.f32.xlu0 %v1045
        %v1047 = vpop.xlane.xlu0 %1046
        %v1048 = vrcp.pop %v1044
        %v1049 = vmul.f32 %v1044, %v1048
        %v1050 = vsub.f32 1.0, %v1049
        %v1051 = vmul.f32 %v1048, %v1050
        %v1052 = vadd.f32 %v1048, %v1051
        %vm1053 = vweird.f32 %v1044
        %vm1054 = vweird.f32 %v1048
        %vm1055 = vmor %vm1053, %vm1054
        %v1056 = vsel %vm1055, %v1048, %v1052
        %v1057 = vand.u32 2147483647, %v1044
        %vm1058 = vcmp.eq.f32.partialorder %v1057, 8.507059e+37
        %v1059 = vand.u32 %v1044, 2147483648
        %v1060 = vor.u32 1.1754944e-38, %v1059
        %v1061 = vsel %vm1058, %v1060, %v1056
        %v1062 = vmul.f32 1.0, %v1061
        %v1063 = vrcp.pop %v1047
        %v1064 = vmul.f32 %v1047, %v1063
        %v1065 = vsub.f32 1.0, %v1064
        %v1066 = vmul.f32 %v1063, %v1065
        %v1067 = vadd.f32 %v1063, %v1066
        %vm1068 = vweird.f32 %v1047
        %vm1069 = vweird.f32 %v1063
        %vm1070 = vmor %vm1068, %vm1069
        %v1071 = vsel %vm1070, %v1063, %v1067
        %v1072 = vand.u32 2147483647, %v1047
        %vm1073 = vcmp.eq.f32.partialorder %v1072, 8.507059e+37
        %v1074 = vand.u32 %v1047, 2147483648
        %v1075 = vor.u32 1.1754944e-38, %v1074
        %v1076 = vsel %vm1073, %v1075, %v1071
        %v1077 = vmul.f32 1.0, %v1076
        %v1078 = vpack.c.bf16 %v1041, %v1039
        %1079 = vrot.lane.b32.xlu0 %v771, 104
        %v1080 = vpop.permute.xlu0 %1079
        %v1083 = vsel %vm717, %v1078, 0
        %1085 = vmatpush.bf16.msra.mxu0 0
        %1086 = vmatpush.bf16.msra.mxu0 0
        %1087 = vmatpush.bf16.msra.mxu0 0
        %1088 = vmatpush.bf16.msra.mxu0 0
        %1089 = vmatpush.bf16.msra.mxu0 0
        %1090 = vmatpush.bf16.msra.mxu0 0
        %1091 = vmatpush.bf16.msra.mxu0 0
        %1092 = vmatpush.bf16.msra.mxu0 %v1080
        %1093 = vmatmul.bf16.gmra.mxu0 %v1083
        %v1094 = vpop.f32.mrf.mxu0
        %v1095 = vadd.f32 0.0, %v1094
        %v1096 = vpop.f32.mrf.mxu0
        %v1097 = vadd.f32 0.0, %v1096
        %1098 = vdwg.mxu0
        %v1099 = vmul.f32 %v1095, %v1062
        %v1100 = vmul.f32 %v1097, %v1077
        %1103 = vrot.lane.b32.xlu0 %v1099, 24
        %v1104 = vpop.permute.xlu0 %1103
        %1105 = vrot.lane.b32.xlu0 %v1100, 24
        %v1106 = vpop.permute.xlu0 %1105
        %vm1109 = vcmask 261312
        %1110 = vst.msk [vmem:[#allocation2] sm:$0xff] %vm1109, %v1104
        %1111 = vst.msk [vmem:[#allocation2 + $0x8] sm:$0xff] %vm1109, %v1106
        %v1112 = vld [vmem:[#allocation2] sm:$0xff]
        %v1113 = vld [vmem:[#allocation2 + $0x8] sm:$0xff]
        %v1114 = vpack.c.bf16 %v1113, %v1112
        %v1115 = vld [vmem:[#allocation12] sm:$0xf]
        %v1116 = vld [vmem:[#allocation12 + $0x4] sm:$0xf]
        %v1117 = vld [vmem:[#allocation12 + $0x8] sm:$0xf]
        %v1118 = vld [vmem:[#allocation12 + $0xc] sm:$0xf]
        %v1123 = vunpack.c.l.b16 %v1115
        %v1124 = vunpack.c.l.b16 %v1116
        %v1125 = vunpack.c.l.b16 %v1117
        %v1126 = vunpack.c.l.b16 %v1118
        %v1127 = vpack.c.b16 %v1124, %v1123
        %v1128 = vpack.c.b16 %v1126, %v1125
        %v1132 = vsel %vm589, %v1114, 0
        %1134 = vmatpush.bf16.msra.mxu0 0
        %1135 = vmatpush.bf16.msra.mxu0 0
        %1136 = vmatpush.bf16.msra.mxu0 0
        %1137 = vmatpush.bf16.msra.mxu0 0
        %1138 = vmatpush.bf16.msra.mxu0 0
        %1139 = vmatpush.bf16.msra.mxu0 0
        %1140 = vmatpush.bf16.msra.mxu0 %v1128
        %1141 = vmatpush.bf16.msra.mxu0 %v1127
        %1142 = vmatmul.bf16.gmra.mxu0 %v1132
        %v1143 = vpop.f32.mrf.mxu0
        %v1144 = vadd.f32 0.0, %v1143
        %v1145 = vpop.f32.mrf.mxu0
        %v1146 = vadd.f32 0.0, %v1145
        %1147 = vdwg.mxu0
        %v1148 = vadd.f32 %v563, %v1144
        %v1149 = vadd.f32 %v564, %v1146
        %v1150 = vld [vmem:[%s9] sm:$0x1]
        %v1152 = vperm.slane %v1150, 0
        %v1154 = vadd.f32 %v1148, %v1152
        %v1155 = vadd.f32 %v1149, %v1152
        %v1156 = vld [vmem:[%s10] sm:$0x1]
        %v1157 = vld [vmem:[%s11] sm:$0x1]
        %v1158 = vsel %vm589, %v1154, 0.0
        %1159 = vadd.xlane.f32.xlu0 %v1158
        %v1160 = vpop.xlane.xlu0 %1159
        %v1161 = vsel %vm589, %v1155, 0.0
        %1162 = vadd.xlane.f32.xlu0 %v1161
        %v1163 = vpop.xlane.xlu0 %1162
        %v1164 = vrcp.pop 32.0
        %v1165 = vmul.f32 32.0, %v1164
        %v1166 = vsub.f32 1.0, %v1165
        %v1167 = vmul.f32 %v1164, %v1166
        %v1168 = vadd.f32 %v1164, %v1167
        %vm1169 = vweird.f32 %v1164
        %v1170 = vsel %vm1169, %v1164, %v1168
        %v1171 = vmul.f32 %v1160, %v1170
        %v1172 = vmul.f32 %v1163, %v1170
        %v1173 = vsub.f32 %v1154, %v1171
        %v1174 = vsub.f32 %v1155, %v1172
        %v1175 = vmul.f32 %v1173, %v1173
        %v1176 = vmul.f32 %v1174, %v1174
        %v1177 = vsel %vm589, %v1175, 0.0
        %1178 = vadd.xlane.f32.xlu0 %v1177
        %v1179 = vpop.xlane.xlu0 %1178
        %v1180 = vsel %vm589, %v1176, 0.0
        %1181 = vadd.xlane.f32.xlu0 %v1180
        %v1182 = vpop.xlane.xlu0 %1181
        %v1183 = vmul.f32 %v1179, %v1170
        %v1184 = vmul.f32 %v1182, %v1170
        %v1185 = vadd.f32 %v1183, 1e-05
        %v1186 = vadd.f32 %v1184, 1e-05
        %v1187 = vrsqrt.pop %v1185
        %v1188 = vmul.f32 %v1187, %v1185
        %v1189 = vmul.f32 %v1188, %v1187
        %v1190 = vmul.f32 0.5, %v1189
        %v1191 = vsub.f32 1.5, %v1190
        %v1192 = vmul.f32 %v1187, %v1191
        %vm1193 = vweird.f32 %v1185
        %vm1194 = vweird.f32 %v1187
        %vm1195 = vmor %vm1193, %vm1194
        %v1196 = vsel %vm1195, %v1187, %v1192
        %v1197 = vrsqrt.pop %v1186
        %v1198 = vmul.f32 %v1197, %v1186
        %v1199 = vmul.f32 %v1198, %v1197
        %v1200 = vmul.f32 0.5, %v1199
        %v1201 = vsub.f32 1.5, %v1200
        %v1202 = vmul.f32 %v1197, %v1201
        %vm1203 = vweird.f32 %v1186
        %vm1204 = vweird.f32 %v1197
        %vm1205 = vmor %vm1203, %vm1204
        %v1206 = vsel %vm1205, %v1197, %v1202
        %v1207 = vmul.f32 %v1173, %v1196
        %v1208 = vmul.f32 %v1174, %v1206
        %v1210 = vperm.slane %v1156, 0
        %v1212 = vmul.f32 %v1207, %v1210
        %v1213 = vmul.f32 %v1208, %v1210
        %v1215 = vperm.slane %v1157, 0
        %v1217 = vadd.f32 %v1212, %v1215
        %v1218 = vadd.f32 %v1213, %v1215
        %1219 = vst.msk [vmem:[%s559] sm:$0xff] %vm589, %v1217
        %1220 = vst.msk [vmem:[%s559 + $0x8] sm:$0xff] %vm589, %v1218
        %s1221 = sand.u32 %s320, 1
        %s1222 = scalar_lea.sflag [#allocation5], %s1221
        %s1223 = sand.u32 %s320, 1
        %s1224 = smul.addr %s1223, 16
        %s1225 = scalar_lea.vmem [#allocation14], %s1224
        // Predicated region
        $region93: #{tpu_custom_call.1} parent=67 // pred_check
          %p1226 = pneg %p330
        $region94: #{tpu_custom_call.1} parent=67 // pred_check_branch
          %1228 = sbr.rel (%p1226) target = $region96
        $region95: #{tpu_custom_call.1} parent=67 // pred_region
          %s1229 = smul.u32 2, %s39
          %1231 = vsyncadd %s1222, 0
          %s1232 = smul.addr %s38, 2
          %s1233 = sadd.s32 %s1229, %s1232
          %s1234 = smul.addr %s1233, 8
          %s1235 = scalar_lea.hbm %s12, %s1234
          %s1236 = sshll.u32 %s1225, 4
          %s1237 = int_to_ptr.vmem [resolvable:$true] %s1236
          %s1238 = sshll.u32 %s1235, 4
          %s1239 = int_to_ptr.hbm [resolvable:$true] %s1238
          %1244 = dma.vmem_to_hbm [thread:$0]  %s1237, 256, %s1239, %s1222, 128, 128, 8
        $region96: #{tpu_custom_call.1} parent=67 // pred_fallthru
          _
      $region68: #{tpu_custom_call.1} parent=5 // pred_fallthru
        _
      %p1245 = scmp.le.s32.totalorder 2, %s29
      // Predicated region
      $region97: #{tpu_custom_call.1} parent=5 // pred_check
        %p1246 = pneg %p1245
      $region98: #{tpu_custom_call.1} parent=5 // pred_check_branch
        %1248 = sbr.rel (%p1246) target = $region100
      $region99: #{tpu_custom_call.1} parent=5 // pred_region
        %s1249 = ssub.s32 %s29, 2
        // Predicated region
        $region101: #{tpu_custom_call.1} parent=99 // pred_check
          %p1250 = pneg %p336
        $region102: #{tpu_custom_call.1} parent=99 // pred_check_branch
          %1252 = sbr.rel (%p1250) target = $region104
        $region103: #{tpu_custom_call.1} parent=99 // pred_region
          %s1253 = sand.u32 %s321, 1
          %s1254 = scalar_lea.sflag [#allocation5], %s1253
          %s1255 = sand.u32 %s321, 1
          %s1256 = smul.addr %s1255, 16
          %s1257 = scalar_lea.vmem [#allocation14], %s1256
          %1259 = dma.done %s1254, 256
        $region104: #{tpu_custom_call.1} parent=99 // pred_fallthru
          _
      $region100: #{tpu_custom_call.1} parent=5 // pred_fallthru
        _
    $region6: #{tpu_custom_call.1} parent=1 // loop_footer
      %s33 = sadd.s32 1, %s29
    $region7: #{tpu_custom_call.1} parent=1 // loop_footer_branch
      %28 = sbr.rel target = $region3
    $region8: #{tpu_custom_call.1} parent=1 // loop_exit
      _
    %1260 = vsyncpa [#allocation4], 1
    %s1261 = scalar_lea.sflag [#allocation4], 1
    %1262 = vsyncpa %s1261, 1
    %1263 = vsyncpa [#allocation7], 1
    %s1264 = scalar_lea.sflag [#allocation7], 1
    %1265 = vsyncpa %s1264, 1
    %1266 = vsyncpa [#allocation10], 1
    %1267 = vsyncpa [#allocation13], 1
    %1268 = vsyncpa [#allocation5], 1
    %s1269 = scalar_lea.sflag [#allocation5], 1
    %1270 = vsyncpa %s1269, 1

</llo_original>
